<compile_context>
chip_gen: v7x
topology: tpu7x:2x2x1
jax: 0.10.0
libtpu: 0.0.40
codegen_flags: <defaults>
</compile_context>

<pallas_src>
import jax
import jax.numpy as jnp
from jax.experimental import pallas as pl
from jax.experimental.pallas import tpu as pltpu


def mlp_kernel(x_ref, w1_ref, b1_ref, w2_ref, b2_ref, w3_ref, b3_ref, o_ref):
    x = x_ref[...]
    # fc1 on the MXU in the input dtype (f32 or bf16), f32 accumulation.
    h = jnp.dot(x, w1_ref[...], preferred_element_type=jnp.float32) + b1_ref[...]
    h = jnp.maximum(h, 0.0)
    h = jnp.dot(h, w2_ref[...], preferred_element_type=jnp.float32) + b2_ref[...]
    h = jnp.maximum(h, 0.0)
    h = jnp.dot(h, w3_ref[...], preferred_element_type=jnp.float32) + b3_ref[...]
    o_ref[...] = jnp.tanh(h).astype(o_ref.dtype)


def _block_diag_repeat(w, p):
    """Block-diagonal matrix with `p` copies of w (fin, fout) on the diagonal.

    Result[pi*fin + r, pj*fout + c] = (pi == pj) * w[r, c].
    Zero blocks contribute exact zeros, so a packed-row matmul against this is
    numerically identical to p independent row matmuls against w.
    """
    fin, fout = w.shape
    eye = jnp.eye(p, dtype=w.dtype)
    blk = jnp.einsum("pq,rc->prqc", eye, w)  # (p, fin, p, fout)
    return blk.reshape(p * fin, p * fout)


def _pick_pack(m):
    """Largest pack factor (rows fused per packed row) that divides m.

    P=64 with d_in=54 gives a 3456-wide (27*128) packed feature axis: zero lane
    padding and clean K tiling on both 128- and 256-wide MXUs.
    """
    for p in (64, 32, 16, 8, 4, 2):
        if m % p == 0:
            return p
    return 1


def _pick_tile_rows(m_rows, row_bytes, *, target_bytes=2 << 20, min_grid=4):
    """Packed-row tile: ~target_bytes of x per grid step (2x double-buffered),
    a multiple of 8 sublanes (unless it is the full dim), and >= min_grid grid
    steps when enough rows exist so the DMA pipeline / multi-TC split has work.
    Per-step VMEM stays well under every generation's scoped default."""
    cap = max(8, (target_bytes // max(row_bytes, 1)) // 8 * 8)
    if m_rows < 8 * min_grid:
        return m_rows if m_rows <= cap else cap
    t = -(-m_rows // min_grid)      # cdiv: at least min_grid steps
    t = -(-t // 8) * 8              # sublane multiple
    return min(cap, t)


def rule_forward(x, w1, b1, w2, b2, w3, b3, *, pack=None, tile_rows=None):
    """x: [..., D_in]. Weights stored (in_features, out_features), i.e. the
    transpose of torch.nn.Linear. Returns f32 [..., cell_state_size].

    Matmul input dtype of fc1 follows x.dtype (pass bf16 upstream to halve HBM
    traffic on the dominant x stream); accumulation and activations are f32.
    """
    lead_shape = x.shape[:-1]
    d_in = x.shape[-1]
    h1 = w1.shape[-1]
    h2 = w2.shape[-1]
    d_out = w3.shape[-1]

    x2d = x.reshape(-1, d_in)
    m = x2d.shape[0]

    p = _pick_pack(m) if pack is None else pack
    if m % p != 0:
        raise ValueError(f"pack={p} must divide the flattened row count {m}")
    mp = m // p

    # Free row-major alias: pack p rows into one wide, lane-dense super-row.
    xp = x2d.reshape(mp, p * d_in)

    mdt = x2d.dtype  # fc1 matmul dtype follows x (bf16 halves weight DMA too)
    w1b = _block_diag_repeat(w1.astype(mdt), p)          # (p*d_in, p*h1)
    w2b = _block_diag_repeat(w2.astype(jnp.float32), p)  # (p*h1, p*h2)
    w3b = _block_diag_repeat(w3.astype(jnp.float32), p)  # (p*h2, p*d_out)
    b1b = jnp.tile(b1.astype(jnp.float32), p).reshape(1, p * h1)
    b2b = jnp.tile(b2.astype(jnp.float32), p).reshape(1, p * h2)
    b3b = jnp.tile(b3.astype(jnp.float32), p).reshape(1, p * d_out)

    row_bytes = p * d_in * x2d.dtype.itemsize
    if tile_rows is None:
        tile_rows = _pick_tile_rows(mp, row_bytes)
    else:
        tile_rows = min(tile_rows, mp)
        if tile_rows != mp and tile_rows % 8:
            tile_rows = min(mp, -(-tile_rows // 8) * 8)

    grid = (pl.cdiv(mp, tile_rows),)  # ragged last block masked by Pallas

    # Constant block index => weights/biases DMA'd once and reused every step.
    full = lambda a: pl.BlockSpec(a.shape, lambda i: (0,) * a.ndim)

    out = pl.pallas_call(
        mlp_kernel,
        out_shape=jax.ShapeDtypeStruct((mp, p * d_out), jnp.float32),
        grid_spec=pltpu.PrefetchScalarGridSpec(
            num_scalar_prefetch=0,
            grid=grid,
            in_specs=[
                pl.BlockSpec((tile_rows, p * d_in), lambda i: (i, 0)),  # x tile
                full(w1b), full(b1b),
                full(w2b), full(b2b),
                full(w3b), full(b3b),
            ],
            out_specs=pl.BlockSpec((tile_rows, p * d_out), lambda i: (i, 0)),
        ),
        compiler_params=pltpu.CompilerParams(
            # Row tiles are independent; megacore TPUs may shard this axis.
            dimension_semantics=("parallel",)),
    )(xp, w1b, b1b, w2b, b2b, w3b, b3b)

    # Free row-major alias back to the per-row layout.
    return out.reshape(m, d_out).reshape(*lead_shape, d_out)


def init_params(key, cell_state_size, n_cell_hyperparams):
    """Deterministic init mimicking nn.Linear shapes (stored transposed)."""
    d_in = (cell_state_size + n_cell_hyperparams) * 9
    k = jax.random.split(key, 6)

    def linear(kw, kb, fan_in, fan_out):
        bound = 1.0 / jnp.sqrt(fan_in)
        w = jax.random.uniform(kw, (fan_in, fan_out), jnp.float32, -bound, bound)
        b = jax.random.uniform(kb, (fan_out,), jnp.float32, -bound, bound)
        return w, b

    w1, b1 = linear(k[0], k[1], d_in, 4)
    w2, b2 = linear(k[2], k[3], 4, 4)
    w3, b3 = linear(k[4], k[5], 4, cell_state_size)
    return (w1, b1, w2, b2, w3, b3)


def rule_forward_ref(x, w1, b1, w2, b2, w3, b3):
    h1 = jnp.maximum(x @ w1 + b1, 0.0)
    h2 = jnp.maximum(h1 @ w2 + b2, 0.0)
    return jnp.tanh(h2 @ w3 + b3)


if __name__ == "__main__":
    cell_state_size = 4
    n_cell_hyperparams = 2
    d_in = (cell_state_size + n_cell_hyperparams) * 9  # 54

    key = jax.random.PRNGKey(0)
    k_params, k_x = jax.random.split(key)
    params = init_params(k_params, cell_state_size, n_cell_hyperparams)

    # x as produced in apply_rule: [layer_width, n_layers, (css + n_hyper)*9]
    layer_width, n_layers = 16, 16
    x = jax.random.normal(k_x, (layer_width, n_layers, d_in), jnp.float32)

    ref = rule_forward_ref(x, *params)

    # f32 path: exact semantics of the torch module (packed, pack=64 here).
    out = rule_forward(x, *params)
    out = jax.block_until_ready(out)
    assert out.shape == (layer_width, n_layers, cell_state_size)
    assert jnp.allclose(out, ref, atol=1e-5, rtol=1e-5)

    # bf16-input path (producer emits bf16 -> half HBM traffic on the x stream).
    out_bf16 = rule_forward(x.astype(jnp.bfloat16), *params)
    out_bf16 = jax.block_until_ready(out_bf16)
    assert jnp.allclose(out_bf16, ref, atol=3e-2, rtol=3e-2)

    # Unpacked fallback path (pack=1) stays correct for awkward row counts.
    out_unpacked = rule_forward(x, *params, pack=1)
    out_unpacked = jax.block_until_ready(out_unpacked)
    assert jnp.allclose(out_unpacked, ref, atol=1e-5, rtol=1e-5)

    print("KERNEL_OK")
</pallas_src>

<mosaic_0001>
module attributes {stable_mosaic.version = 11 : i64} {
  func.func @mlp_kernel(%arg0: i32, %arg1: memref<4x3456xf32, #tpu.memory_space<vmem>>, %arg2: memref<3456x256xf32, #tpu.memory_space<vmem>>, %arg3: memref<1x256xf32, #tpu.memory_space<vmem>>, %arg4: memref<256x256xf32, #tpu.memory_space<vmem>>, %arg5: memref<1x256xf32, #tpu.memory_space<vmem>>, %arg6: memref<256x256xf32, #tpu.memory_space<vmem>>, %arg7: memref<1x256xf32, #tpu.memory_space<vmem>>, %arg8: memref<4x256xf32, #tpu.memory_space<vmem>>) attributes {dimension_semantics = [#tpu.dimension_semantics<parallel>], iteration_bounds = array<i64: 1>, scalar_prefetch = 0 : i64, scratch_operands = 0 : i64, tpu.core_type = #tpu.core_type<tc>, window_params = [{transform_indices = @transform_0, window_bounds = array<i64: 4, 3456>}, {pipeline_mode = #tpu.pipeline_mode<synchronous>, transform_indices = @transform_1, window_bounds = array<i64: 3456, 256>}, {pipeline_mode = #tpu.pipeline_mode<synchronous>, transform_indices = @transform_2, window_bounds = array<i64: 1, 256>}, {pipeline_mode = #tpu.pipeline_mode<synchronous>, transform_indices = @transform_3, window_bounds = array<i64: 256, 256>}, {pipeline_mode = #tpu.pipeline_mode<synchronous>, transform_indices = @transform_4, window_bounds = array<i64: 1, 256>}, {pipeline_mode = #tpu.pipeline_mode<synchronous>, transform_indices = @transform_5, window_bounds = array<i64: 256, 256>}, {pipeline_mode = #tpu.pipeline_mode<synchronous>, transform_indices = @transform_6, window_bounds = array<i64: 1, 256>}, {transform_indices = @transform_7, window_bounds = array<i64: 4, 256>}]} {
    %c0 = arith.constant 0 : index
    %c0_0 = arith.constant 0 : index
    %0 = vector.load %arg1[%c0, %c0_0] : memref<4x3456xf32, #tpu.memory_space<vmem>>, vector<4x3456xf32>
    %c0_1 = arith.constant 0 : index
    %c0_2 = arith.constant 0 : index
    %1 = vector.load %arg2[%c0_1, %c0_2] : memref<3456x256xf32, #tpu.memory_space<vmem>>, vector<3456x256xf32>
    %cst = arith.constant dense<0.000000e+00> : vector<4x256xf32>
    %2 = tpu.matmul %0, %1, %cst {dimension_numbers = #tpu.dot_dimension_numbers<[1], [0], [0], [1], [0, 0, 1, 1], [], []>} : vector<4x3456xf32>, vector<3456x256xf32>, vector<4x256xf32> -> vector<4x256xf32>
    %c0_3 = arith.constant 0 : index
    %c0_4 = arith.constant 0 : index
    %3 = vector.load %arg3[%c0_3, %c0_4] : memref<1x256xf32, #tpu.memory_space<vmem>>, vector<1x256xf32>
    %4 = vector.broadcast %3 : vector<1x256xf32> to vector<4x256xf32>
    %5 = arith.addf %2, %4 : vector<4x256xf32>
    %cst_5 = arith.constant 0.000000e+00 : f32
    %6 = vector.broadcast %cst_5 : f32 to vector<4x256xf32>
    %7 = arith.maximumf %5, %6 : vector<4x256xf32>
    %c0_6 = arith.constant 0 : index
    %c0_7 = arith.constant 0 : index
    %8 = vector.load %arg4[%c0_6, %c0_7] : memref<256x256xf32, #tpu.memory_space<vmem>>, vector<256x256xf32>
    %cst_8 = arith.constant dense<0.000000e+00> : vector<4x256xf32>
    %9 = tpu.matmul %7, %8, %cst_8 {dimension_numbers = #tpu.dot_dimension_numbers<[1], [0], [0], [1], [0, 0, 1, 1], [], []>} : vector<4x256xf32>, vector<256x256xf32>, vector<4x256xf32> -> vector<4x256xf32>
    %c0_9 = arith.constant 0 : index
    %c0_10 = arith.constant 0 : index
    %10 = vector.load %arg5[%c0_9, %c0_10] : memref<1x256xf32, #tpu.memory_space<vmem>>, vector<1x256xf32>
    %11 = vector.broadcast %10 : vector<1x256xf32> to vector<4x256xf32>
    %12 = arith.addf %9, %11 : vector<4x256xf32>
    %cst_11 = arith.constant 0.000000e+00 : f32
    %13 = vector.broadcast %cst_11 : f32 to vector<4x256xf32>
    %14 = arith.maximumf %12, %13 : vector<4x256xf32>
    %c0_12 = arith.constant 0 : index
    %c0_13 = arith.constant 0 : index
    %15 = vector.load %arg6[%c0_12, %c0_13] : memref<256x256xf32, #tpu.memory_space<vmem>>, vector<256x256xf32>
    %cst_14 = arith.constant dense<0.000000e+00> : vector<4x256xf32>
    %16 = tpu.matmul %14, %15, %cst_14 {dimension_numbers = #tpu.dot_dimension_numbers<[1], [0], [0], [1], [0, 0, 1, 1], [], []>} : vector<4x256xf32>, vector<256x256xf32>, vector<4x256xf32> -> vector<4x256xf32>
    %c0_15 = arith.constant 0 : index
    %c0_16 = arith.constant 0 : index
    %17 = vector.load %arg7[%c0_15, %c0_16] : memref<1x256xf32, #tpu.memory_space<vmem>>, vector<1x256xf32>
    %18 = vector.broadcast %17 : vector<1x256xf32> to vector<4x256xf32>
    %19 = arith.addf %16, %18 : vector<4x256xf32>
    %20 = math.tanh %19 : vector<4x256xf32>
    %c0_17 = arith.constant 0 : index
    %c0_18 = arith.constant 0 : index
    %21 = vector.load %arg8[%c0_17, %c0_18] : memref<4x256xf32, #tpu.memory_space<vmem>>, vector<4x256xf32>
    tpu.vector_store %arg8[%c0_17, %c0_18], %20 {strides = array<i32>} : memref<4x256xf32, #tpu.memory_space<vmem>>, vector<4x256xf32>,
    return
  }
  func.func @transform_0(%arg0: i32) -> (i32, i32) {
    %c0_i32 = arith.constant 0 : i32
    %c0_i32_0 = arith.constant 0 : i32
    return %arg0, %c0_i32 : i32, i32
  }
  func.func @transform_1(%arg0: i32) -> (i32, i32) {
    %c0_i32 = arith.constant 0 : i32
    %c0_i32_0 = arith.constant 0 : i32
    %c0_i32_1 = arith.constant 0 : i32
    return %c0_i32, %c0_i32_0 : i32, i32
  }
  func.func @transform_2(%arg0: i32) -> (i32, i32) {
    %c0_i32 = arith.constant 0 : i32
    %c0_i32_0 = arith.constant 0 : i32
    %c0_i32_1 = arith.constant 0 : i32
    return %c0_i32, %c0_i32_0 : i32, i32
  }
  func.func @transform_3(%arg0: i32) -> (i32, i32) {
    %c0_i32 = arith.constant 0 : i32
    %c0_i32_0 = arith.constant 0 : i32
    %c0_i32_1 = arith.constant 0 : i32
    return %c0_i32, %c0_i32_0 : i32, i32
  }
  func.func @transform_4(%arg0: i32) -> (i32, i32) {
    %c0_i32 = arith.constant 0 : i32
    %c0_i32_0 = arith.constant 0 : i32
    %c0_i32_1 = arith.constant 0 : i32
    return %c0_i32, %c0_i32_0 : i32, i32
  }
  func.func @transform_5(%arg0: i32) -> (i32, i32) {
    %c0_i32 = arith.constant 0 : i32
    %c0_i32_0 = arith.constant 0 : i32
    %c0_i32_1 = arith.constant 0 : i32
    return %c0_i32, %c0_i32_0 : i32, i32
  }
  func.func @transform_6(%arg0: i32) -> (i32, i32) {
    %c0_i32 = arith.constant 0 : i32
    %c0_i32_0 = arith.constant 0 : i32
    %c0_i32_1 = arith.constant 0 : i32
    return %c0_i32, %c0_i32_0 : i32, i32
  }
  func.func @transform_7(%arg0: i32) -> (i32, i32) {
    %c0_i32 = arith.constant 0 : i32
    %c0_i32_0 = arith.constant 0 : i32
    return %arg0, %c0_i32 : i32, i32
  }
}

</mosaic_0001>

<llo_original>
// kernel: tpu_custom_call.1
$region0: #{tpu_custom_call.1}
  #allocation0 [shape = 'u32[]', space=smem, size = 0x4, offset = 0x4, fixed_abs, tag = 'smem constant byte address 0x4 - core index']
  #allocation1 [shape = 'u32[144,128]{1,0:T(1,128)}', space=vmem, size = 0x12000, scoped, tag = 'internal scratch']
  %s0 = inlined_call_operand.hbm [shape: f32[4,3456], index: 0, kind: input, shape index: {}]
  %s1 = inlined_call_operand.hbm [shape: f32[3456,256], index: 1, kind: input, shape index: {}]
  %s2 = inlined_call_operand.hbm [shape: f32[1,256], index: 2, kind: input, shape index: {}]
  %s3 = inlined_call_operand.hbm [shape: f32[256,256], index: 3, kind: input, shape index: {}]
  %s4 = inlined_call_operand.hbm [shape: f32[1,256], index: 4, kind: input, shape index: {}]
  %s5 = inlined_call_operand.hbm [shape: f32[256,256], index: 5, kind: input, shape index: {}]
  %s6 = inlined_call_operand.hbm [shape: f32[1,256], index: 6, kind: input, shape index: {}]
  %s7 = inlined_call_operand.hbm [shape: f32[4,256], index: 7, kind: output, shape index: {}]
  %s8 = sld [smem:[#allocation0]]
  $region66: #{tpu_custom_call.1} parent=0
    _
  %s10 = ssub.s32 1, %s8
  %s11 = scalar_select 0, %s10, %s8
  $region1: #{tpu_custom_call.1} parent=0
    #allocation2 [shape = 'u8[55296]{0}', space=vmem, size = 0xd800, scoped, tag = 'input window, operand 0, single buffered']
    #allocation3 [shape = 's32[1]{0}', space=sflag, size = 0x4, scoped, tag = 'scoped memory for tpu_custom_call.1']
    #allocation4 [shape = 's32[1]{0}', space=sflag, size = 0x4, scoped, tag = 'scoped memory for tpu_custom_call.1']
    #allocation5 [shape = 'u8[3538944]{0}', space=vmem, size = 0x360000, scoped, tag = 'input window, operand 1, single buffered']
    #allocation6 [shape = 's32[1]{0}', space=sflag, size = 0x4, scoped, tag = 'scoped memory for tpu_custom_call.1']
    #allocation7 [shape = 'u8[1024]{0}', space=vmem, size = 0x400, scoped, tag = 'input window, operand 2, single buffered']
    #allocation8 [shape = 'u8[262144]{0}', space=vmem, size = 0x40000, scoped, tag = 'input window, operand 3, single buffered']
    #allocation9 [shape = 's32[1]{0}', space=sflag, size = 0x4, scoped, tag = 'scoped memory for tpu_custom_call.1']
    #allocation10 [shape = 'u8[1024]{0}', space=vmem, size = 0x400, scoped, tag = 'input window, operand 4, single buffered']
    #allocation11 [shape = 'u8[262144]{0}', space=vmem, size = 0x40000, scoped, tag = 'input window, operand 5, single buffered']
    #allocation12 [shape = 's32[1]{0}', space=sflag, size = 0x4, scoped, tag = 'scoped memory for tpu_custom_call.1']
    #allocation13 [shape = 'u8[1024]{0}', space=vmem, size = 0x400, scoped, tag = 'input window, operand 6, single buffered']
    #allocation14 [shape = 'u8[4096]{0}', space=vmem, size = 0x1000, scoped, tag = 'output window, operand 0, single buffered']
    %12 = vsyncpa [#allocation3], 0
    %13 = vsyncpa [#allocation6], 0
    %14 = vsyncpa [#allocation9], 0
    %15 = vsyncpa [#allocation12], 0
    %16 = vsyncpa [#allocation4], 0
    // Predicated region
    $region2: #{tpu_custom_call.1} parent=1 // pred_check
      _
    $region3: #{tpu_custom_call.1} parent=1 // pred_check_branch
      %18 = sbr.rel (0) target = $region5
    $region4: #{tpu_custom_call.1} parent=1 // pred_region
      %s20 = ssub.s32 1728, 1728
      %21 = vsyncadd [#allocation3], %s20
      %s23 = sshll.u32 [#allocation2], 4
      %s24 = int_to_ptr.vmem [resolvable:$true] %s23
      %26 = dma.hbm_to_vmem [thread:$0]  %s0, 1728, %s24, [#allocation3]
    $region5: #{tpu_custom_call.1} parent=1 // pred_fallthru
      _
    // Predicated region
    $region6: #{tpu_custom_call.1} parent=1 // pred_check
      _
    $region7: #{tpu_custom_call.1} parent=1 // pred_check_branch
      %28 = sbr.rel (0) target = $region9
    $region8: #{tpu_custom_call.1} parent=1 // pred_region
      %s30 = ssub.s32 110592, 110592
      %31 = vsyncadd [#allocation6], %s30
      %s32 = sshll.u32 [#allocation5], 4
      %s33 = int_to_ptr.vmem [resolvable:$true] %s32
      %38 = dma.hbm_to_vmem [thread:$0]  %s1, 110592, %s33, [#allocation6], 256, 256, 16
    $region9: #{tpu_custom_call.1} parent=1 // pred_fallthru
      _
    // Predicated region
    $region10: #{tpu_custom_call.1} parent=1 // pred_check
      _
    $region11: #{tpu_custom_call.1} parent=1 // pred_check_branch
      %40 = sbr.rel (0) target = $region13
    $region12: #{tpu_custom_call.1} parent=1 // pred_region
      %s42 = ssub.s32 32, 32
      %43 = vsyncadd [#allocation6], %s42
      %s45 = sshll.u32 [#allocation7], 4
      %s46 = int_to_ptr.vmem [resolvable:$true] %s45
      %48 = dma.hbm_to_vmem [thread:$0]  %s2, 32, %s46, [#allocation6]
    $region13: #{tpu_custom_call.1} parent=1 // pred_fallthru
      _
    // Predicated region
    $region14: #{tpu_custom_call.1} parent=1 // pred_check
      _
    $region15: #{tpu_custom_call.1} parent=1 // pred_check_branch
      %50 = sbr.rel (0) target = $region17
    $region16: #{tpu_custom_call.1} parent=1 // pred_region
      %s52 = ssub.s32 8192, 8192
      %53 = vsyncadd [#allocation9], %s52
      %s54 = sshll.u32 [#allocation8], 4
      %s55 = int_to_ptr.vmem [resolvable:$true] %s54
      %60 = dma.hbm_to_vmem [thread:$0]  %s3, 8192, %s55, [#allocation9], 256, 256, 16
    $region17: #{tpu_custom_call.1} parent=1 // pred_fallthru
      _
    // Predicated region
    $region18: #{tpu_custom_call.1} parent=1 // pred_check
      _
    $region19: #{tpu_custom_call.1} parent=1 // pred_check_branch
      %62 = sbr.rel (0) target = $region21
    $region20: #{tpu_custom_call.1} parent=1 // pred_region
      %s64 = ssub.s32 32, 32
      %65 = vsyncadd [#allocation9], %s64
      %s67 = sshll.u32 [#allocation10], 4
      %s68 = int_to_ptr.vmem [resolvable:$true] %s67
      %70 = dma.hbm_to_vmem [thread:$0]  %s4, 32, %s68, [#allocation9]
    $region21: #{tpu_custom_call.1} parent=1 // pred_fallthru
      _
    // Predicated region
    $region22: #{tpu_custom_call.1} parent=1 // pred_check
      _
    $region23: #{tpu_custom_call.1} parent=1 // pred_check_branch
      %72 = sbr.rel (0) target = $region25
    $region24: #{tpu_custom_call.1} parent=1 // pred_region
      %s74 = ssub.s32 8192, 8192
      %75 = vsyncadd [#allocation12], %s74
      %s76 = sshll.u32 [#allocation11], 4
      %s77 = int_to_ptr.vmem [resolvable:$true] %s76
      %82 = dma.hbm_to_vmem [thread:$0]  %s5, 8192, %s77, [#allocation12], 256, 256, 16
    $region25: #{tpu_custom_call.1} parent=1 // pred_fallthru
      _
    // Predicated region
    $region26: #{tpu_custom_call.1} parent=1 // pred_check
      _
    $region27: #{tpu_custom_call.1} parent=1 // pred_check_branch
      %84 = sbr.rel (0) target = $region29
    $region28: #{tpu_custom_call.1} parent=1 // pred_region
      %s86 = ssub.s32 32, 32
      %87 = vsyncadd [#allocation12], %s86
      %s89 = sshll.u32 [#allocation13], 4
      %s90 = int_to_ptr.vmem [resolvable:$true] %s89
      %92 = dma.hbm_to_vmem [thread:$0]  %s6, 32, %s90, [#allocation12]
    $region29: #{tpu_custom_call.1} parent=1 // pred_fallthru
      _
    // Predicated region
    $region30: #{tpu_custom_call.1} parent=1 // pred_check
      _
    $region31: #{tpu_custom_call.1} parent=1 // pred_check_branch
      %94 = sbr.rel (0) target = $region33
    $region32: #{tpu_custom_call.1} parent=1 // pred_region
      %95 = dma.done [#allocation3], 1728
    $region33: #{tpu_custom_call.1} parent=1 // pred_fallthru
      _
    // Predicated region
    $region34: #{tpu_custom_call.1} parent=1 // pred_check
      _
    $region35: #{tpu_custom_call.1} parent=1 // pred_check_branch
      %97 = sbr.rel (0) target = $region37
    $region36: #{tpu_custom_call.1} parent=1 // pred_region
      %98 = dma.done [#allocation6], 110592
    $region37: #{tpu_custom_call.1} parent=1 // pred_fallthru
      _
    // Predicated region
    $region38: #{tpu_custom_call.1} parent=1 // pred_check
      _
    $region39: #{tpu_custom_call.1} parent=1 // pred_check_branch
      %100 = sbr.rel (0) target = $region41
    $region40: #{tpu_custom_call.1} parent=1 // pred_region
      %101 = dma.done [#allocation6], 32
    $region41: #{tpu_custom_call.1} parent=1 // pred_fallthru
      _
    // Predicated region
    $region42: #{tpu_custom_call.1} parent=1 // pred_check
      _
    $region43: #{tpu_custom_call.1} parent=1 // pred_check_branch
      %103 = sbr.rel (0) target = $region45
    $region44: #{tpu_custom_call.1} parent=1 // pred_region
      %104 = dma.done [#allocation9], 8192
    $region45: #{tpu_custom_call.1} parent=1 // pred_fallthru
      _
    // Predicated region
    $region46: #{tpu_custom_call.1} parent=1 // pred_check
      _
    $region47: #{tpu_custom_call.1} parent=1 // pred_check_branch
      %106 = sbr.rel (0) target = $region49
    $region48: #{tpu_custom_call.1} parent=1 // pred_region
      %107 = dma.done [#allocation9], 32
    $region49: #{tpu_custom_call.1} parent=1 // pred_fallthru
      _
    // Predicated region
    $region50: #{tpu_custom_call.1} parent=1 // pred_check
      _
    $region51: #{tpu_custom_call.1} parent=1 // pred_check_branch
      %109 = sbr.rel (0) target = $region53
    $region52: #{tpu_custom_call.1} parent=1 // pred_region
      %110 = dma.done [#allocation12], 8192
    $region53: #{tpu_custom_call.1} parent=1 // pred_fallthru
      _
    // Predicated region
    $region54: #{tpu_custom_call.1} parent=1 // pred_check
      _
    $region55: #{tpu_custom_call.1} parent=1 // pred_check_branch
      %112 = sbr.rel (0) target = $region57
    $region56: #{tpu_custom_call.1} parent=1 // pred_region
      %113 = dma.done [#allocation12], 32
    $region57: #{tpu_custom_call.1} parent=1 // pred_fallthru
      _
    %v114 = vld [vmem:[#allocation2] sm:$0xff]
    %v115 = vld [vmem:[#allocation2 + $0x8] sm:$0xff]
    %v116 = vld [vmem:[#allocation2 + $0x10] sm:$0xff]
    %v117 = vld [vmem:[#allocation2 + $0x18] sm:$0xff]
    %v118 = vld [vmem:[#allocation2 + $0x20] sm:$0xff]
    %v119 = vld [vmem:[#allocation2 + $0x28] sm:$0xff]
    %v120 = vld [vmem:[#allocation2 + $0x30] sm:$0xff]
    %v121 = vld [vmem:[#allocation2 + $0x38] sm:$0xff]
    %v122 = vld [vmem:[#allocation2 + $0x40] sm:$0xff]
    %v123 = vld [vmem:[#allocation2 + $0x48] sm:$0xff]
    %v124 = vld [vmem:[#allocation2 + $0x50] sm:$0xff]
    %v125 = vld [vmem:[#allocation2 + $0x58] sm:$0xff]
    %v126 = vld [vmem:[#allocation2 + $0x60] sm:$0xff]
    %v127 = vld [vmem:[#allocation2 + $0x68] sm:$0xf]
    %v128 = vld [vmem:[#allocation5] sm:$0xff]
    %v129 = vld [vmem:[#allocation5 + $0x8] sm:$0xff]
    %v130 = vld [vmem:[#allocation5 + $0x10] sm:$0xff]
    %v131 = vld [vmem:[#allocation5 + $0x18] sm:$0xff]
    %v132 = vld [vmem:[#allocation5 + $0x20] sm:$0xff]
    %v133 = vld [vmem:[#allocation5 + $0x28] sm:$0xff]
    %v134 = vld [vmem:[#allocation5 + $0x30] sm:$0xff]
    %v135 = vld [vmem:[#allocation5 + $0x38] sm:$0xff]
    %v136 = vld [vmem:[#allocation5 + $0x40] sm:$0xff]
    %v137 = vld [vmem:[#allocation5 + $0x48] sm:$0xff]
    %v138 = vld [vmem:[#allocation5 + $0x50] sm:$0xff]
    %v139 = vld [vmem:[#allocation5 + $0x58] sm:$0xff]
    %v140 = vld [vmem:[#allocation5 + $0x60] sm:$0xff]
    %v141 = vld [vmem:[#allocation5 + $0x68] sm:$0xff]
    %v142 = vld [vmem:[#allocation5 + $0x70] sm:$0xff]
    %v143 = vld [vmem:[#allocation5 + $0x78] sm:$0xff]
    %v144 = vld [vmem:[#allocation5 + $0x80] sm:$0xff]
    %v145 = vld [vmem:[#allocation5 + $0x88] sm:$0xff]
    %v146 = vld [vmem:[#allocation5 + $0x90] sm:$0xff]
    %v147 = vld [vmem:[#allocation5 + $0x98] sm:$0xff]
    %v148 = vld [vmem:[#allocation5 + $0xa0] sm:$0xff]
    %v149 = vld [vmem:[#allocation5 + $0xa8] sm:$0xff]
    %v150 = vld [vmem:[#allocation5 + $0xb0] sm:$0xff]
    %v151 = vld [vmem:[#allocation5 + $0xb8] sm:$0xff]
    %v152 = vld [vmem:[#allocation5 + $0xc0] sm:$0xff]
    %v153 = vld [vmem:[#allocation5 + $0xc8] sm:$0xff]
    %v154 = vld [vmem:[#allocation5 + $0xd0] sm:$0xff]
    %v155 = vld [vmem:[#allocation5 + $0xd8] sm:$0xff]
    %v156 = vld [vmem:[#allocation5 + $0xe0] sm:$0xff]
    %v157 = vld [vmem:[#allocation5 + $0xe8] sm:$0xff]
    %v158 = vld [vmem:[#allocation5 + $0xf0] sm:$0xff]
    %v159 = vld [vmem:[#allocation5 + $0xf8] sm:$0xff]
    %v160 = vld [vmem:[#allocation5 + $0x100] sm:$0xff]
    %v161 = vld [vmem:[#allocation5 + $0x108] sm:$0xff]
    %v162 = vld [vmem:[#allocation5 + $0x110] sm:$0xff]
    %v163 = vld [vmem:[#allocation5 + $0x118] sm:$0xff]
    %v164 = vld [vmem:[#allocation5 + $0x120] sm:$0xff]
    %v165 = vld [vmem:[#allocation5 + $0x128] sm:$0xff]
    %v166 = vld [vmem:[#allocation5 + $0x130] sm:$0xff]
    %v167 = vld [vmem:[#allocation5 + $0x138] sm:$0xff]
    %v168 = vld [vmem:[#allocation5 + $0x140] sm:$0xff]
    %v169 = vld [vmem:[#allocation5 + $0x148] sm:$0xff]
    %v170 = vld [vmem:[#allocation5 + $0x150] sm:$0xff]
    %v171 = vld [vmem:[#allocation5 + $0x158] sm:$0xff]
    %v172 = vld [vmem:[#allocation5 + $0x160] sm:$0xff]
    %v173 = vld [vmem:[#allocation5 + $0x168] sm:$0xff]
    %v174 = vld [vmem:[#allocation5 + $0x170] sm:$0xff]
    %v175 = vld [vmem:[#allocation5 + $0x178] sm:$0xff]
    %v176 = vld [vmem:[#allocation5 + $0x180] sm:$0xff]
    %v177 = vld [vmem:[#allocation5 + $0x188] sm:$0xff]
    %v178 = vld [vmem:[#allocation5 + $0x190] sm:$0xff]
    %v179 = vld [vmem:[#allocation5 + $0x198] sm:$0xff]
    %v180 = vld [vmem:[#allocation5 + $0x1a0] sm:$0xff]
    %v181 = vld [vmem:[#allocation5 + $0x1a8] sm:$0xff]
    %v182 = vld [vmem:[#allocation5 + $0x1b0] sm:$0xff]
    %v183 = vld [vmem:[#allocation5 + $0x1b8] sm:$0xff]
    %v184 = vld [vmem:[#allocation5 + $0x1c0] sm:$0xff]
    %v185 = vld [vmem:[#allocation5 + $0x1c8] sm:$0xff]
    %v186 = vld [vmem:[#allocation5 + $0x1d0] sm:$0xff]
    %v187 = vld [vmem:[#allocation5 + $0x1d8] sm:$0xff]
    %v188 = vld [vmem:[#allocation5 + $0x1e0] sm:$0xff]
    %v189 = vld [vmem:[#allocation5 + $0x1e8] sm:$0xff]
    %v190 = vld [vmem:[#allocation5 + $0x1f0] sm:$0xff]
    %v191 = vld [vmem:[#allocation5 + $0x1f8] sm:$0xff]
    %v192 = vld [vmem:[#allocation5 + $0x200] sm:$0xff]
    %v193 = vld [vmem:[#allocation5 + $0x208] sm:$0xff]
    %v194 = vld [vmem:[#allocation5 + $0x210] sm:$0xff]
    %v195 = vld [vmem:[#allocation5 + $0x218] sm:$0xff]
    %v196 = vld [vmem:[#allocation5 + $0x220] sm:$0xff]
    %v197 = vld [vmem:[#allocation5 + $0x228] sm:$0xff]
    %v198 = vld [vmem:[#allocation5 + $0x230] sm:$0xff]
    %v199 = vld [vmem:[#allocation5 + $0x238] sm:$0xff]
    %v200 = vld [vmem:[#allocation5 + $0x240] sm:$0xff]
    %v201 = vld [vmem:[#allocation5 + $0x248] sm:$0xff]
    %v202 = vld [vmem:[#allocation5 + $0x250] sm:$0xff]
    %v203 = vld [vmem:[#allocation5 + $0x258] sm:$0xff]
    %v204 = vld [vmem:[#allocation5 + $0x260] sm:$0xff]
    %v205 = vld [vmem:[#allocation5 + $0x268] sm:$0xff]
    %v206 = vld [vmem:[#allocation5 + $0x270] sm:$0xff]
    %v207 = vld [vmem:[#allocation5 + $0x278] sm:$0xff]
    %v208 = vld [vmem:[#allocation5 + $0x280] sm:$0xff]
    %v209 = vld [vmem:[#allocation5 + $0x288] sm:$0xff]
    %v210 = vld [vmem:[#allocation5 + $0x290] sm:$0xff]
    %v211 = vld [vmem:[#allocation5 + $0x298] sm:$0xff]
    %v212 = vld [vmem:[#allocation5 + $0x2a0] sm:$0xff]
    %v213 = vld [vmem:[#allocation5 + $0x2a8] sm:$0xff]
    %v214 = vld [vmem:[#allocation5 + $0x2b0] sm:$0xff]
    %v215 = vld [vmem:[#allocation5 + $0x2b8] sm:$0xff]
    %v216 = vld [vmem:[#allocation5 + $0x2c0] sm:$0xff]
    %v217 = vld [vmem:[#allocation5 + $0x2c8] sm:$0xff]
    %v218 = vld [vmem:[#allocation5 + $0x2d0] sm:$0xff]
    %v219 = vld [vmem:[#allocation5 + $0x2d8] sm:$0xff]
    %v220 = vld [vmem:[#allocation5 + $0x2e0] sm:$0xff]
    %v221 = vld [vmem:[#allocation5 + $0x2e8] sm:$0xff]
    %v222 = vld [vmem:[#allocation5 + $0x2f0] sm:$0xff]
    %v223 = vld [vmem:[#allocation5 + $0x2f8] sm:$0xff]
    %v224 = vld [vmem:[#allocation5 + $0x300] sm:$0xff]
    %v225 = vld [vmem:[#allocation5 + $0x308] sm:$0xff]
    %v226 = vld [vmem:[#allocation5 + $0x310] sm:$0xff]
    %v227 = vld [vmem:[#allocation5 + $0x318] sm:$0xff]
    %v228 = vld [vmem:[#allocation5 + $0x320] sm:$0xff]
    %v229 = vld [vmem:[#allocation5 + $0x328] sm:$0xff]
    %v230 = vld [vmem:[#allocation5 + $0x330] sm:$0xff]
    %v231 = vld [vmem:[#allocation5 + $0x338] sm:$0xff]
    %v232 = vld [vmem:[#allocation5 + $0x340] sm:$0xff]
    %v233 = vld [vmem:[#allocation5 + $0x348] sm:$0xff]
    %v234 = vld [vmem:[#allocation5 + $0x350] sm:$0xff]
    %v235 = vld [vmem:[#allocation5 + $0x358] sm:$0xff]
    %v236 = vld [vmem:[#allocation5 + $0x360] sm:$0xff]
    %v237 = vld [vmem:[#allocation5 + $0x368] sm:$0xff]
    %v238 = vld [vmem:[#allocation5 + $0x370] sm:$0xff]
    %v239 = vld [vmem:[#allocation5 + $0x378] sm:$0xff]
    %v240 = vld [vmem:[#allocation5 + $0x380] sm:$0xff]
    %v241 = vld [vmem:[#allocation5 + $0x388] sm:$0xff]
    %v242 = vld [vmem:[#allocation5 + $0x390] sm:$0xff]
    %v243 = vld [vmem:[#allocation5 + $0x398] sm:$0xff]
    %v244 = vld [vmem:[#allocation5 + $0x3a0] sm:$0xff]
    %v245 = vld [vmem:[#allocation5 + $0x3a8] sm:$0xff]
    %v246 = vld [vmem:[#allocation5 + $0x3b0] sm:$0xff]
    %v247 = vld [vmem:[#allocation5 + $0x3b8] sm:$0xff]
    %v248 = vld [vmem:[#allocation5 + $0x3c0] sm:$0xff]
    %v249 = vld [vmem:[#allocation5 + $0x3c8] sm:$0xff]
    %v250 = vld [vmem:[#allocation5 + $0x3d0] sm:$0xff]
    %v251 = vld [vmem:[#allocation5 + $0x3d8] sm:$0xff]
    %v252 = vld [vmem:[#allocation5 + $0x3e0] sm:$0xff]
    %v253 = vld [vmem:[#allocation5 + $0x3e8] sm:$0xff]
    %v254 = vld [vmem:[#allocation5 + $0x3f0] sm:$0xff]
    %v255 = vld [vmem:[#allocation5 + $0x3f8] sm:$0xff]
    %v256 = vld [vmem:[#allocation5 + $0x400] sm:$0xff]
    %v257 = vld [vmem:[#allocation5 + $0x408] sm:$0xff]
    %v258 = vld [vmem:[#allocation5 + $0x410] sm:$0xff]
    %v259 = vld [vmem:[#allocation5 + $0x418] sm:$0xff]
    %v260 = vld [vmem:[#allocation5 + $0x420] sm:$0xff]
    %v261 = vld [vmem:[#allocation5 + $0x428] sm:$0xff]
    %v262 = vld [vmem:[#allocation5 + $0x430] sm:$0xff]
    %v263 = vld [vmem:[#allocation5 + $0x438] sm:$0xff]
    %v264 = vld [vmem:[#allocation5 + $0x440] sm:$0xff]
    %v265 = vld [vmem:[#allocation5 + $0x448] sm:$0xff]
    %v266 = vld [vmem:[#allocation5 + $0x450] sm:$0xff]
    %v267 = vld [vmem:[#allocation5 + $0x458] sm:$0xff]
    %v268 = vld [vmem:[#allocation5 + $0x460] sm:$0xff]
    %v269 = vld [vmem:[#allocation5 + $0x468] sm:$0xff]
    %v270 = vld [vmem:[#allocation5 + $0x470] sm:$0xff]
    %v271 = vld [vmem:[#allocation5 + $0x478] sm:$0xff]
    %v272 = vld [vmem:[#allocation5 + $0x480] sm:$0xff]
    %v273 = vld [vmem:[#allocation5 + $0x488] sm:$0xff]
    %v274 = vld [vmem:[#allocation5 + $0x490] sm:$0xff]
    %v275 = vld [vmem:[#allocation5 + $0x498] sm:$0xff]
    %v276 = vld [vmem:[#allocation5 + $0x4a0] sm:$0xff]
    %v277 = vld [vmem:[#allocation5 + $0x4a8] sm:$0xff]
    %v278 = vld [vmem:[#allocation5 + $0x4b0] sm:$0xff]
    %v279 = vld [vmem:[#allocation5 + $0x4b8] sm:$0xff]
    %v280 = vld [vmem:[#allocation5 + $0x4c0] sm:$0xff]
    %v281 = vld [vmem:[#allocation5 + $0x4c8] sm:$0xff]
    %v282 = vld [vmem:[#allocation5 + $0x4d0] sm:$0xff]
    %v283 = vld [vmem:[#allocation5 + $0x4d8] sm:$0xff]
    %v284 = vld [vmem:[#allocation5 + $0x4e0] sm:$0xff]
    %v285 = vld [vmem:[#allocation5 + $0x4e8] sm:$0xff]
    %v286 = vld [vmem:[#allocation5 + $0x4f0] sm:$0xff]
    %v287 = vld [vmem:[#allocation5 + $0x4f8] sm:$0xff]
    %v288 = vld [vmem:[#allocation5 + $0x500] sm:$0xff]
    %v289 = vld [vmem:[#allocation5 + $0x508] sm:$0xff]
    %v290 = vld [vmem:[#allocation5 + $0x510] sm:$0xff]
    %v291 = vld [vmem:[#allocation5 + $0x518] sm:$0xff]
    %v292 = vld [vmem:[#allocation5 + $0x520] sm:$0xff]
    %v293 = vld [vmem:[#allocation5 + $0x528] sm:$0xff]
    %v294 = vld [vmem:[#allocation5 + $0x530] sm:$0xff]
    %v295 = vld [vmem:[#allocation5 + $0x538] sm:$0xff]
    %v296 = vld [vmem:[#allocation5 + $0x540] sm:$0xff]
    %v297 = vld [vmem:[#allocation5 + $0x548] sm:$0xff]
    %v298 = vld [vmem:[#allocation5 + $0x550] sm:$0xff]
    %v299 = vld [vmem:[#allocation5 + $0x558] sm:$0xff]
    %v300 = vld [vmem:[#allocation5 + $0x560] sm:$0xff]
    %v301 = vld [vmem:[#allocation5 + $0x568] sm:$0xff]
    %v302 = vld [vmem:[#allocation5 + $0x570] sm:$0xff]
    %v303 = vld [vmem:[#allocation5 + $0x578] sm:$0xff]
    %v304 = vld [vmem:[#allocation5 + $0x580] sm:$0xff]
    %v305 = vld [vmem:[#allocation5 + $0x588] sm:$0xff]
    %v306 = vld [vmem:[#allocation5 + $0x590] sm:$0xff]
    %v307 = vld [vmem:[#allocation5 + $0x598] sm:$0xff]
    %v308 = vld [vmem:[#allocation5 + $0x5a0] sm:$0xff]
    %v309 = vld [vmem:[#allocation5 + $0x5a8] sm:$0xff]
    %v310 = vld [vmem:[#allocation5 + $0x5b0] sm:$0xff]
    %v311 = vld [vmem:[#allocation5 + $0x5b8] sm:$0xff]
    %v312 = vld [vmem:[#allocation5 + $0x5c0] sm:$0xff]
    %v313 = vld [vmem:[#allocation5 + $0x5c8] sm:$0xff]
    %v314 = vld [vmem:[#allocation5 + $0x5d0] sm:$0xff]
    %v315 = vld [vmem:[#allocation5 + $0x5d8] sm:$0xff]
    %v316 = vld [vmem:[#allocation5 + $0x5e0] sm:$0xff]
    %v317 = vld [vmem:[#allocation5 + $0x5e8] sm:$0xff]
    %v318 = vld [vmem:[#allocation5 + $0x5f0] sm:$0xff]
    %v319 = vld [vmem:[#allocation5 + $0x5f8] sm:$0xff]
    %v320 = vld [vmem:[#allocation5 + $0x600] sm:$0xff]
    %v321 = vld [vmem:[#allocation5 + $0x608] sm:$0xff]
    %v322 = vld [vmem:[#allocation5 + $0x610] sm:$0xff]
    %v323 = vld [vmem:[#allocation5 + $0x618] sm:$0xff]
    %v324 = vld [vmem:[#allocation5 + $0x620] sm:$0xff]
    %v325 = vld [vmem:[#allocation5 + $0x628] sm:$0xff]
    %v326 = vld [vmem:[#allocation5 + $0x630] sm:$0xff]
    %v327 = vld [vmem:[#allocation5 + $0x638] sm:$0xff]
    %v328 = vld [vmem:[#allocation5 + $0x640] sm:$0xff]
    %v329 = vld [vmem:[#allocation5 + $0x648] sm:$0xff]
    %v330 = vld [vmem:[#allocation5 + $0x650] sm:$0xff]
    %v331 = vld [vmem:[#allocation5 + $0x658] sm:$0xff]
    %v332 = vld [vmem:[#allocation5 + $0x660] sm:$0xff]
    %v333 = vld [vmem:[#allocation5 + $0x668] sm:$0xff]
    %v334 = vld [vmem:[#allocation5 + $0x670] sm:$0xff]
    %v335 = vld [vmem:[#allocation5 + $0x678] sm:$0xff]
    %v336 = vld [vmem:[#allocation5 + $0x680] sm:$0xff]
    %v337 = vld [vmem:[#allocation5 + $0x688] sm:$0xff]
    %v338 = vld [vmem:[#allocation5 + $0x690] sm:$0xff]
    %v339 = vld [vmem:[#allocation5 + $0x698] sm:$0xff]
    %v340 = vld [vmem:[#allocation5 + $0x6a0] sm:$0xff]
    %v341 = vld [vmem:[#allocation5 + $0x6a8] sm:$0xff]
    %v342 = vld [vmem:[#allocation5 + $0x6b0] sm:$0xff]
    %v343 = vld [vmem:[#allocation5 + $0x6b8] sm:$0xff]
    %v344 = vld [vmem:[#allocation5 + $0x6c0] sm:$0xff]
    %v345 = vld [vmem:[#allocation5 + $0x6c8] sm:$0xff]
    %v346 = vld [vmem:[#allocation5 + $0x6d0] sm:$0xff]
    %v347 = vld [vmem:[#allocation5 + $0x6d8] sm:$0xff]
    %v348 = vld [vmem:[#allocation5 + $0x6e0] sm:$0xff]
    %v349 = vld [vmem:[#allocation5 + $0x6e8] sm:$0xff]
    %v350 = vld [vmem:[#allocation5 + $0x6f0] sm:$0xff]
    %v351 = vld [vmem:[#allocation5 + $0x6f8] sm:$0xff]
    %v352 = vld [vmem:[#allocation5 + $0x700] sm:$0xff]
    %v353 = vld [vmem:[#allocation5 + $0x708] sm:$0xff]
    %v354 = vld [vmem:[#allocation5 + $0x710] sm:$0xff]
    %v355 = vld [vmem:[#allocation5 + $0x718] sm:$0xff]
    %v356 = vld [vmem:[#allocation5 + $0x720] sm:$0xff]
    %v357 = vld [vmem:[#allocation5 + $0x728] sm:$0xff]
    %v358 = vld [vmem:[#allocation5 + $0x730] sm:$0xff]
    %v359 = vld [vmem:[#allocation5 + $0x738] sm:$0xff]
    %v360 = vld [vmem:[#allocation5 + $0x740] sm:$0xff]
    %v361 = vld [vmem:[#allocation5 + $0x748] sm:$0xff]
    %v362 = vld [vmem:[#allocation5 + $0x750] sm:$0xff]
    %v363 = vld [vmem:[#allocation5 + $0x758] sm:$0xff]
    %v364 = vld [vmem:[#allocation5 + $0x760] sm:$0xff]
    %v365 = vld [vmem:[#allocation5 + $0x768] sm:$0xff]
    %v366 = vld [vmem:[#allocation5 + $0x770] sm:$0xff]
    %v367 = vld [vmem:[#allocation5 + $0x778] sm:$0xff]
    %v368 = vld [vmem:[#allocation5 + $0x780] sm:$0xff]
    %v369 = vld [vmem:[#allocation5 + $0x788] sm:$0xff]
    %v370 = vld [vmem:[#allocation5 + $0x790] sm:$0xff]
    %v371 = vld [vmem:[#allocation5 + $0x798] sm:$0xff]
    %v372 = vld [vmem:[#allocation5 + $0x7a0] sm:$0xff]
    %v373 = vld [vmem:[#allocation5 + $0x7a8] sm:$0xff]
    %v374 = vld [vmem:[#allocation5 + $0x7b0] sm:$0xff]
    %v375 = vld [vmem:[#allocation5 + $0x7b8] sm:$0xff]
    %v376 = vld [vmem:[#allocation5 + $0x7c0] sm:$0xff]
    %v377 = vld [vmem:[#allocation5 + $0x7c8] sm:$0xff]
    %v378 = vld [vmem:[#allocation5 + $0x7d0] sm:$0xff]
    %v379 = vld [vmem:[#allocation5 + $0x7d8] sm:$0xff]
    %v380 = vld [vmem:[#allocation5 + $0x7e0] sm:$0xff]
    %v381 = vld [vmem:[#allocation5 + $0x7e8] sm:$0xff]
    %v382 = vld [vmem:[#allocation5 + $0x7f0] sm:$0xff]
    %v383 = vld [vmem:[#allocation5 + $0x7f8] sm:$0xff]
    %v384 = vld [vmem:[#allocation5 + $0x800] sm:$0xff]
    %v385 = vld [vmem:[#allocation5 + $0x808] sm:$0xff]
    %v386 = vld [vmem:[#allocation5 + $0x810] sm:$0xff]
    %v387 = vld [vmem:[#allocation5 + $0x818] sm:$0xff]
    %v388 = vld [vmem:[#allocation5 + $0x820] sm:$0xff]
    %v389 = vld [vmem:[#allocation5 + $0x828] sm:$0xff]
    %v390 = vld [vmem:[#allocation5 + $0x830] sm:$0xff]
    %v391 = vld [vmem:[#allocation5 + $0x838] sm:$0xff]
    %v392 = vld [vmem:[#allocation5 + $0x840] sm:$0xff]
    %v393 = vld [vmem:[#allocation5 + $0x848] sm:$0xff]
    %v394 = vld [vmem:[#allocation5 + $0x850] sm:$0xff]
    %v395 = vld [vmem:[#allocation5 + $0x858] sm:$0xff]
    %v396 = vld [vmem:[#allocation5 + $0x860] sm:$0xff]
    %v397 = vld [vmem:[#allocation5 + $0x868] sm:$0xff]
    %v398 = vld [vmem:[#allocation5 + $0x870] sm:$0xff]
    %v399 = vld [vmem:[#allocation5 + $0x878] sm:$0xff]
    %v400 = vld [vmem:[#allocation5 + $0x880] sm:$0xff]
    %v401 = vld [vmem:[#allocation5 + $0x888] sm:$0xff]
    %v402 = vld [vmem:[#allocation5 + $0x890] sm:$0xff]
    %v403 = vld [vmem:[#allocation5 + $0x898] sm:$0xff]
    %v404 = vld [vmem:[#allocation5 + $0x8a0] sm:$0xff]
    %v405 = vld [vmem:[#allocation5 + $0x8a8] sm:$0xff]
    %v406 = vld [vmem:[#allocation5 + $0x8b0] sm:$0xff]
    %v407 = vld [vmem:[#allocation5 + $0x8b8] sm:$0xff]
    %v408 = vld [vmem:[#allocation5 + $0x8c0] sm:$0xff]
    %v409 = vld [vmem:[#allocation5 + $0x8c8] sm:$0xff]
    %v410 = vld [vmem:[#allocation5 + $0x8d0] sm:$0xff]
    %v411 = vld [vmem:[#allocation5 + $0x8d8] sm:$0xff]
    %v412 = vld [vmem:[#allocation5 + $0x8e0] sm:$0xff]
    %v413 = vld [vmem:[#allocation5 + $0x8e8] sm:$0xff]
    %v414 = vld [vmem:[#allocation5 + $0x8f0] sm:$0xff]
    %v415 = vld [vmem:[#allocation5 + $0x8f8] sm:$0xff]
    %v416 = vld [vmem:[#allocation5 + $0x900] sm:$0xff]
    %v417 = vld [vmem:[#allocation5 + $0x908] sm:$0xff]
    %v418 = vld [vmem:[#allocation5 + $0x910] sm:$0xff]
    %v419 = vld [vmem:[#allocation5 + $0x918] sm:$0xff]
    %v420 = vld [vmem:[#allocation5 + $0x920] sm:$0xff]
    %v421 = vld [vmem:[#allocation5 + $0x928] sm:$0xff]
    %v422 = vld [vmem:[#allocation5 + $0x930] sm:$0xff]
    %v423 = vld [vmem:[#allocation5 + $0x938] sm:$0xff]
    %v424 = vld [vmem:[#allocation5 + $0x940] sm:$0xff]
    %v425 = vld [vmem:[#allocation5 + $0x948] sm:$0xff]
    %v426 = vld [vmem:[#allocation5 + $0x950] sm:$0xff]
    %v427 = vld [vmem:[#allocation5 + $0x958] sm:$0xff]
    %v428 = vld [vmem:[#allocation5 + $0x960] sm:$0xff]
    %v429 = vld [vmem:[#allocation5 + $0x968] sm:$0xff]
    %v430 = vld [vmem:[#allocation5 + $0x970] sm:$0xff]
    %v431 = vld [vmem:[#allocation5 + $0x978] sm:$0xff]
    %v432 = vld [vmem:[#allocation5 + $0x980] sm:$0xff]
    %v433 = vld [vmem:[#allocation5 + $0x988] sm:$0xff]
    %v434 = vld [vmem:[#allocation5 + $0x990] sm:$0xff]
    %v435 = vld [vmem:[#allocation5 + $0x998] sm:$0xff]
    %v436 = vld [vmem:[#allocation5 + $0x9a0] sm:$0xff]
    %v437 = vld [vmem:[#allocation5 + $0x9a8] sm:$0xff]
    %v438 = vld [vmem:[#allocation5 + $0x9b0] sm:$0xff]
    %v439 = vld [vmem:[#allocation5 + $0x9b8] sm:$0xff]
    %v440 = vld [vmem:[#allocation5 + $0x9c0] sm:$0xff]
    %v441 = vld [vmem:[#allocation5 + $0x9c8] sm:$0xff]
    %v442 = vld [vmem:[#allocation5 + $0x9d0] sm:$0xff]
    %v443 = vld [vmem:[#allocation5 + $0x9d8] sm:$0xff]
    %v444 = vld [vmem:[#allocation5 + $0x9e0] sm:$0xff]
    %v445 = vld [vmem:[#allocation5 + $0x9e8] sm:$0xff]
    %v446 = vld [vmem:[#allocation5 + $0x9f0] sm:$0xff]
    %v447 = vld [vmem:[#allocation5 + $0x9f8] sm:$0xff]
    %v448 = vld [vmem:[#allocation5 + $0xa00] sm:$0xff]
    %v449 = vld [vmem:[#allocation5 + $0xa08] sm:$0xff]
    %v450 = vld [vmem:[#allocation5 + $0xa10] sm:$0xff]
    %v451 = vld [vmem:[#allocation5 + $0xa18] sm:$0xff]
    %v452 = vld [vmem:[#allocation5 + $0xa20] sm:$0xff]
    %v453 = vld [vmem:[#allocation5 + $0xa28] sm:$0xff]
    %v454 = vld [vmem:[#allocation5 + $0xa30] sm:$0xff]
    %v455 = vld [vmem:[#allocation5 + $0xa38] sm:$0xff]
    %v456 = vld [vmem:[#allocation5 + $0xa40] sm:$0xff]
    %v457 = vld [vmem:[#allocation5 + $0xa48] sm:$0xff]
    %v458 = vld [vmem:[#allocation5 + $0xa50] sm:$0xff]
    %v459 = vld [vmem:[#allocation5 + $0xa58] sm:$0xff]
    %v460 = vld [vmem:[#allocation5 + $0xa60] sm:$0xff]
    %v461 = vld [vmem:[#allocation5 + $0xa68] sm:$0xff]
    %v462 = vld [vmem:[#allocation5 + $0xa70] sm:$0xff]
    %v463 = vld [vmem:[#allocation5 + $0xa78] sm:$0xff]
    %v464 = vld [vmem:[#allocation5 + $0xa80] sm:$0xff]
    %v465 = vld [vmem:[#allocation5 + $0xa88] sm:$0xff]
    %v466 = vld [vmem:[#allocation5 + $0xa90] sm:$0xff]
    %v467 = vld [vmem:[#allocation5 + $0xa98] sm:$0xff]
    %v468 = vld [vmem:[#allocation5 + $0xaa0] sm:$0xff]
    %v469 = vld [vmem:[#allocation5 + $0xaa8] sm:$0xff]
    %v470 = vld [vmem:[#allocation5 + $0xab0] sm:$0xff]
    %v471 = vld [vmem:[#allocation5 + $0xab8] sm:$0xff]
    %v472 = vld [vmem:[#allocation5 + $0xac0] sm:$0xff]
    %v473 = vld [vmem:[#allocation5 + $0xac8] sm:$0xff]
    %v474 = vld [vmem:[#allocation5 + $0xad0] sm:$0xff]
    %v475 = vld [vmem:[#allocation5 + $0xad8] sm:$0xff]
    %v476 = vld [vmem:[#allocation5 + $0xae0] sm:$0xff]
    %v477 = vld [vmem:[#allocation5 + $0xae8] sm:$0xff]
    %v478 = vld [vmem:[#allocation5 + $0xaf0] sm:$0xff]
    %v479 = vld [vmem:[#allocation5 + $0xaf8] sm:$0xff]
    %v480 = vld [vmem:[#allocation5 + $0xb00] sm:$0xff]
    %v481 = vld [vmem:[#allocation5 + $0xb08] sm:$0xff]
    %v482 = vld [vmem:[#allocation5 + $0xb10] sm:$0xff]
    %v483 = vld [vmem:[#allocation5 + $0xb18] sm:$0xff]
    %v484 = vld [vmem:[#allocation5 + $0xb20] sm:$0xff]
    %v485 = vld [vmem:[#allocation5 + $0xb28] sm:$0xff]
    %v486 = vld [vmem:[#allocation5 + $0xb30] sm:$0xff]
    %v487 = vld [vmem:[#allocation5 + $0xb38] sm:$0xff]
    %v488 = vld [vmem:[#allocation5 + $0xb40] sm:$0xff]
    %v489 = vld [vmem:[#allocation5 + $0xb48] sm:$0xff]
    %v490 = vld [vmem:[#allocation5 + $0xb50] sm:$0xff]
    %v491 = vld [vmem:[#allocation5 + $0xb58] sm:$0xff]
    %v492 = vld [vmem:[#allocation5 + $0xb60] sm:$0xff]
    %v493 = vld [vmem:[#allocation5 + $0xb68] sm:$0xff]
    %v494 = vld [vmem:[#allocation5 + $0xb70] sm:$0xff]
    %v495 = vld [vmem:[#allocation5 + $0xb78] sm:$0xff]
    %v496 = vld [vmem:[#allocation5 + $0xb80] sm:$0xff]
    %v497 = vld [vmem:[#allocation5 + $0xb88] sm:$0xff]
    %v498 = vld [vmem:[#allocation5 + $0xb90] sm:$0xff]
    %v499 = vld [vmem:[#allocation5 + $0xb98] sm:$0xff]
    %v500 = vld [vmem:[#allocation5 + $0xba0] sm:$0xff]
    %v501 = vld [vmem:[#allocation5 + $0xba8] sm:$0xff]
    %v502 = vld [vmem:[#allocation5 + $0xbb0] sm:$0xff]
    %v503 = vld [vmem:[#allocation5 + $0xbb8] sm:$0xff]
    %v504 = vld [vmem:[#allocation5 + $0xbc0] sm:$0xff]
    %v505 = vld [vmem:[#allocation5 + $0xbc8] sm:$0xff]
    %v506 = vld [vmem:[#allocation5 + $0xbd0] sm:$0xff]
    %v507 = vld [vmem:[#allocation5 + $0xbd8] sm:$0xff]
    %v508 = vld [vmem:[#allocation5 + $0xbe0] sm:$0xff]
    %v509 = vld [vmem:[#allocation5 + $0xbe8] sm:$0xff]
    %v510 = vld [vmem:[#allocation5 + $0xbf0] sm:$0xff]
    %v511 = vld [vmem:[#allocation5 + $0xbf8] sm:$0xff]
    %v512 = vld [vmem:[#allocation5 + $0xc00] sm:$0xff]
    %v513 = vld [vmem:[#allocation5 + $0xc08] sm:$0xff]
    %v514 = vld [vmem:[#allocation5 + $0xc10] sm:$0xff]
    %v515 = vld [vmem:[#allocation5 + $0xc18] sm:$0xff]
    %v516 = vld [vmem:[#allocation5 + $0xc20] sm:$0xff]
    %v517 = vld [vmem:[#allocation5 + $0xc28] sm:$0xff]
    %v518 = vld [vmem:[#allocation5 + $0xc30] sm:$0xff]
    %v519 = vld [vmem:[#allocation5 + $0xc38] sm:$0xff]
    %v520 = vld [vmem:[#allocation5 + $0xc40] sm:$0xff]
    %v521 = vld [vmem:[#allocation5 + $0xc48] sm:$0xff]
    %v522 = vld [vmem:[#allocation5 + $0xc50] sm:$0xff]
    %v523 = vld [vmem:[#allocation5 + $0xc58] sm:$0xff]
    %v524 = vld [vmem:[#allocation5 + $0xc60] sm:$0xff]
    %v525 = vld [vmem:[#allocation5 + $0xc68] sm:$0xff]
    %v526 = vld [vmem:[#allocation5 + $0xc70] sm:$0xff]
    %v527 = vld [vmem:[#allocation5 + $0xc78] sm:$0xff]
    %v528 = vld [vmem:[#allocation5 + $0xc80] sm:$0xff]
    %v529 = vld [vmem:[#allocation5 + $0xc88] sm:$0xff]
    %v530 = vld [vmem:[#allocation5 + $0xc90] sm:$0xff]
    %v531 = vld [vmem:[#allocation5 + $0xc98] sm:$0xff]
    %v532 = vld [vmem:[#allocation5 + $0xca0] sm:$0xff]
    %v533 = vld [vmem:[#allocation5 + $0xca8] sm:$0xff]
    %v534 = vld [vmem:[#allocation5 + $0xcb0] sm:$0xff]
    %v535 = vld [vmem:[#allocation5 + $0xcb8] sm:$0xff]
    %v536 = vld [vmem:[#allocation5 + $0xcc0] sm:$0xff]
    %v537 = vld [vmem:[#allocation5 + $0xcc8] sm:$0xff]
    %v538 = vld [vmem:[#allocation5 + $0xcd0] sm:$0xff]
    %v539 = vld [vmem:[#allocation5 + $0xcd8] sm:$0xff]
    %v540 = vld [vmem:[#allocation5 + $0xce0] sm:$0xff]
    %v541 = vld [vmem:[#allocation5 + $0xce8] sm:$0xff]
    %v542 = vld [vmem:[#allocation5 + $0xcf0] sm:$0xff]
    %v543 = vld [vmem:[#allocation5 + $0xcf8] sm:$0xff]
    %v544 = vld [vmem:[#allocation5 + $0xd00] sm:$0xff]
    %v545 = vld [vmem:[#allocation5 + $0xd08] sm:$0xff]
    %v546 = vld [vmem:[#allocation5 + $0xd10] sm:$0xff]
    %v547 = vld [vmem:[#allocation5 + $0xd18] sm:$0xff]
    %v548 = vld [vmem:[#allocation5 + $0xd20] sm:$0xff]
    %v549 = vld [vmem:[#allocation5 + $0xd28] sm:$0xff]
    %v550 = vld [vmem:[#allocation5 + $0xd30] sm:$0xff]
    %v551 = vld [vmem:[#allocation5 + $0xd38] sm:$0xff]
    %v552 = vld [vmem:[#allocation5 + $0xd40] sm:$0xff]
    %v553 = vld [vmem:[#allocation5 + $0xd48] sm:$0xff]
    %v554 = vld [vmem:[#allocation5 + $0xd50] sm:$0xff]
    %v555 = vld [vmem:[#allocation5 + $0xd58] sm:$0xff]
    %v556 = vld [vmem:[#allocation5 + $0xd60] sm:$0xff]
    %v557 = vld [vmem:[#allocation5 + $0xd68] sm:$0xff]
    %v558 = vld [vmem:[#allocation5 + $0xd70] sm:$0xff]
    %v559 = vld [vmem:[#allocation5 + $0xd78] sm:$0xff]
    %v560 = vld [vmem:[#allocation5 + $0xd80] sm:$0xff]
    %v561 = vld [vmem:[#allocation5 + $0xd88] sm:$0xff]
    %v562 = vld [vmem:[#allocation5 + $0xd90] sm:$0xff]
    %v563 = vld [vmem:[#allocation5 + $0xd98] sm:$0xff]
    %v564 = vld [vmem:[#allocation5 + $0xda0] sm:$0xff]
    %v565 = vld [vmem:[#allocation5 + $0xda8] sm:$0xff]
    %v566 = vld [vmem:[#allocation5 + $0xdb0] sm:$0xff]
    %v567 = vld [vmem:[#allocation5 + $0xdb8] sm:$0xff]
    %v568 = vld [vmem:[#allocation5 + $0xdc0] sm:$0xff]
    %v569 = vld [vmem:[#allocation5 + $0xdc8] sm:$0xff]
    %v570 = vld [vmem:[#allocation5 + $0xdd0] sm:$0xff]
    %v571 = vld [vmem:[#allocation5 + $0xdd8] sm:$0xff]
    %v572 = vld [vmem:[#allocation5 + $0xde0] sm:$0xff]
    %v573 = vld [vmem:[#allocation5 + $0xde8] sm:$0xff]
    %v574 = vld [vmem:[#allocation5 + $0xdf0] sm:$0xff]
    %v575 = vld [vmem:[#allocation5 + $0xdf8] sm:$0xff]
    %v576 = vld [vmem:[#allocation5 + $0xe00] sm:$0xff]
    %v577 = vld [vmem:[#allocation5 + $0xe08] sm:$0xff]
    %v578 = vld [vmem:[#allocation5 + $0xe10] sm:$0xff]
    %v579 = vld [vmem:[#allocation5 + $0xe18] sm:$0xff]
    %v580 = vld [vmem:[#allocation5 + $0xe20] sm:$0xff]
    %v581 = vld [vmem:[#allocation5 + $0xe28] sm:$0xff]
    %v582 = vld [vmem:[#allocation5 + $0xe30] sm:$0xff]
    %v583 = vld [vmem:[#allocation5 + $0xe38] sm:$0xff]
    %v584 = vld [vmem:[#allocation5 + $0xe40] sm:$0xff]
    %v585 = vld [vmem:[#allocation5 + $0xe48] sm:$0xff]
    %v586 = vld [vmem:[#allocation5 + $0xe50] sm:$0xff]
    %v587 = vld [vmem:[#allocation5 + $0xe58] sm:$0xff]
    %v588 = vld [vmem:[#allocation5 + $0xe60] sm:$0xff]
    %v589 = vld [vmem:[#allocation5 + $0xe68] sm:$0xff]
    %v590 = vld [vmem:[#allocation5 + $0xe70] sm:$0xff]
    %v591 = vld [vmem:[#allocation5 + $0xe78] sm:$0xff]
    %v592 = vld [vmem:[#allocation5 + $0xe80] sm:$0xff]
    %v593 = vld [vmem:[#allocation5 + $0xe88] sm:$0xff]
    %v594 = vld [vmem:[#allocation5 + $0xe90] sm:$0xff]
    %v595 = vld [vmem:[#allocation5 + $0xe98] sm:$0xff]
    %v596 = vld [vmem:[#allocation5 + $0xea0] sm:$0xff]
    %v597 = vld [vmem:[#allocation5 + $0xea8] sm:$0xff]
    %v598 = vld [vmem:[#allocation5 + $0xeb0] sm:$0xff]
    %v599 = vld [vmem:[#allocation5 + $0xeb8] sm:$0xff]
    %v600 = vld [vmem:[#allocation5 + $0xec0] sm:$0xff]
    %v601 = vld [vmem:[#allocation5 + $0xec8] sm:$0xff]
    %v602 = vld [vmem:[#allocation5 + $0xed0] sm:$0xff]
    %v603 = vld [vmem:[#allocation5 + $0xed8] sm:$0xff]
    %v604 = vld [vmem:[#allocation5 + $0xee0] sm:$0xff]
    %v605 = vld [vmem:[#allocation5 + $0xee8] sm:$0xff]
    %v606 = vld [vmem:[#allocation5 + $0xef0] sm:$0xff]
    %v607 = vld [vmem:[#allocation5 + $0xef8] sm:$0xff]
    %v608 = vld [vmem:[#allocation5 + $0xf00] sm:$0xff]
    %v609 = vld [vmem:[#allocation5 + $0xf08] sm:$0xff]
    %v610 = vld [vmem:[#allocation5 + $0xf10] sm:$0xff]
    %v611 = vld [vmem:[#allocation5 + $0xf18] sm:$0xff]
    %v612 = vld [vmem:[#allocation5 + $0xf20] sm:$0xff]
    %v613 = vld [vmem:[#allocation5 + $0xf28] sm:$0xff]
    %v614 = vld [vmem:[#allocation5 + $0xf30] sm:$0xff]
    %v615 = vld [vmem:[#allocation5 + $0xf38] sm:$0xff]
    %v616 = vld [vmem:[#allocation5 + $0xf40] sm:$0xff]
    %v617 = vld [vmem:[#allocation5 + $0xf48] sm:$0xff]
    %v618 = vld [vmem:[#allocation5 + $0xf50] sm:$0xff]
    %v619 = vld [vmem:[#allocation5 + $0xf58] sm:$0xff]
    %v620 = vld [vmem:[#allocation5 + $0xf60] sm:$0xff]
    %v621 = vld [vmem:[#allocation5 + $0xf68] sm:$0xff]
    %v622 = vld [vmem:[#allocation5 + $0xf70] sm:$0xff]
    %v623 = vld [vmem:[#allocation5 + $0xf78] sm:$0xff]
    %v624 = vld [vmem:[#allocation5 + $0xf80] sm:$0xff]
    %v625 = vld [vmem:[#allocation5 + $0xf88] sm:$0xff]
    %v626 = vld [vmem:[#allocation5 + $0xf90] sm:$0xff]
    %v627 = vld [vmem:[#allocation5 + $0xf98] sm:$0xff]
    %v628 = vld [vmem:[#allocation5 + $0xfa0] sm:$0xff]
    %v629 = vld [vmem:[#allocation5 + $0xfa8] sm:$0xff]
    %v630 = vld [vmem:[#allocation5 + $0xfb0] sm:$0xff]
    %v631 = vld [vmem:[#allocation5 + $0xfb8] sm:$0xff]
    %v632 = vld [vmem:[#allocation5 + $0xfc0] sm:$0xff]
    %v633 = vld [vmem:[#allocation5 + $0xfc8] sm:$0xff]
    %v634 = vld [vmem:[#allocation5 + $0xfd0] sm:$0xff]
    %v635 = vld [vmem:[#allocation5 + $0xfd8] sm:$0xff]
    %v636 = vld [vmem:[#allocation5 + $0xfe0] sm:$0xff]
    %v637 = vld [vmem:[#allocation5 + $0xfe8] sm:$0xff]
    %v638 = vld [vmem:[#allocation5 + $0xff0] sm:$0xff]
    %v639 = vld [vmem:[#allocation5 + $0xff8] sm:$0xff]
    %v640 = vld [vmem:[#allocation5 + $0x1000] sm:$0xff]
    %v641 = vld [vmem:[#allocation5 + $0x1008] sm:$0xff]
    %v642 = vld [vmem:[#allocation5 + $0x1010] sm:$0xff]
    %v643 = vld [vmem:[#allocation5 + $0x1018] sm:$0xff]
    %v644 = vld [vmem:[#allocation5 + $0x1020] sm:$0xff]
    %v645 = vld [vmem:[#allocation5 + $0x1028] sm:$0xff]
    %v646 = vld [vmem:[#allocation5 + $0x1030] sm:$0xff]
    %v647 = vld [vmem:[#allocation5 + $0x1038] sm:$0xff]
    %v648 = vld [vmem:[#allocation5 + $0x1040] sm:$0xff]
    %v649 = vld [vmem:[#allocation5 + $0x1048] sm:$0xff]
    %v650 = vld [vmem:[#allocation5 + $0x1050] sm:$0xff]
    %v651 = vld [vmem:[#allocation5 + $0x1058] sm:$0xff]
    %v652 = vld [vmem:[#allocation5 + $0x1060] sm:$0xff]
    %v653 = vld [vmem:[#allocation5 + $0x1068] sm:$0xff]
    %v654 = vld [vmem:[#allocation5 + $0x1070] sm:$0xff]
    %v655 = vld [vmem:[#allocation5 + $0x1078] sm:$0xff]
    %v656 = vld [vmem:[#allocation5 + $0x1080] sm:$0xff]
    %v657 = vld [vmem:[#allocation5 + $0x1088] sm:$0xff]
    %v658 = vld [vmem:[#allocation5 + $0x1090] sm:$0xff]
    %v659 = vld [vmem:[#allocation5 + $0x1098] sm:$0xff]
    %v660 = vld [vmem:[#allocation5 + $0x10a0] sm:$0xff]
    %v661 = vld [vmem:[#allocation5 + $0x10a8] sm:$0xff]
    %v662 = vld [vmem:[#allocation5 + $0x10b0] sm:$0xff]
    %v663 = vld [vmem:[#allocation5 + $0x10b8] sm:$0xff]
    %v664 = vld [vmem:[#allocation5 + $0x10c0] sm:$0xff]
    %v665 = vld [vmem:[#allocation5 + $0x10c8] sm:$0xff]
    %v666 = vld [vmem:[#allocation5 + $0x10d0] sm:$0xff]
    %v667 = vld [vmem:[#allocation5 + $0x10d8] sm:$0xff]
    %v668 = vld [vmem:[#allocation5 + $0x10e0] sm:$0xff]
    %v669 = vld [vmem:[#allocation5 + $0x10e8] sm:$0xff]
    %v670 = vld [vmem:[#allocation5 + $0x10f0] sm:$0xff]
    %v671 = vld [vmem:[#allocation5 + $0x10f8] sm:$0xff]
    %v672 = vld [vmem:[#allocation5 + $0x1100] sm:$0xff]
    %v673 = vld [vmem:[#allocation5 + $0x1108] sm:$0xff]
    %v674 = vld [vmem:[#allocation5 + $0x1110] sm:$0xff]
    %v675 = vld [vmem:[#allocation5 + $0x1118] sm:$0xff]
    %v676 = vld [vmem:[#allocation5 + $0x1120] sm:$0xff]
    %v677 = vld [vmem:[#allocation5 + $0x1128] sm:$0xff]
    %v678 = vld [vmem:[#allocation5 + $0x1130] sm:$0xff]
    %v679 = vld [vmem:[#allocation5 + $0x1138] sm:$0xff]
    %v680 = vld [vmem:[#allocation5 + $0x1140] sm:$0xff]
    %v681 = vld [vmem:[#allocation5 + $0x1148] sm:$0xff]
    %v682 = vld [vmem:[#allocation5 + $0x1150] sm:$0xff]
    %v683 = vld [vmem:[#allocation5 + $0x1158] sm:$0xff]
    %v684 = vld [vmem:[#allocation5 + $0x1160] sm:$0xff]
    %v685 = vld [vmem:[#allocation5 + $0x1168] sm:$0xff]
    %v686 = vld [vmem:[#allocation5 + $0x1170] sm:$0xff]
    %v687 = vld [vmem:[#allocation5 + $0x1178] sm:$0xff]
    %v688 = vld [vmem:[#allocation5 + $0x1180] sm:$0xff]
    %v689 = vld [vmem:[#allocation5 + $0x1188] sm:$0xff]
    %v690 = vld [vmem:[#allocation5 + $0x1190] sm:$0xff]
    %v691 = vld [vmem:[#allocation5 + $0x1198] sm:$0xff]
    %v692 = vld [vmem:[#allocation5 + $0x11a0] sm:$0xff]
    %v693 = vld [vmem:[#allocation5 + $0x11a8] sm:$0xff]
    %v694 = vld [vmem:[#allocation5 + $0x11b0] sm:$0xff]
    %v695 = vld [vmem:[#allocation5 + $0x11b8] sm:$0xff]
    %v696 = vld [vmem:[#allocation5 + $0x11c0] sm:$0xff]
    %v697 = vld [vmem:[#allocation5 + $0x11c8] sm:$0xff]
    %v698 = vld [vmem:[#allocation5 + $0x11d0] sm:$0xff]
    %v699 = vld [vmem:[#allocation5 + $0x11d8] sm:$0xff]
    %v700 = vld [vmem:[#allocation5 + $0x11e0] sm:$0xff]
    %v701 = vld [vmem:[#allocation5 + $0x11e8] sm:$0xff]
    %v702 = vld [vmem:[#allocation5 + $0x11f0] sm:$0xff]
    %v703 = vld [vmem:[#allocation5 + $0x11f8] sm:$0xff]
    %v704 = vld [vmem:[#allocation5 + $0x1200] sm:$0xff]
    %v705 = vld [vmem:[#allocation5 + $0x1208] sm:$0xff]
    %v706 = vld [vmem:[#allocation5 + $0x1210] sm:$0xff]
    %v707 = vld [vmem:[#allocation5 + $0x1218] sm:$0xff]
    %v708 = vld [vmem:[#allocation5 + $0x1220] sm:$0xff]
    %v709 = vld [vmem:[#allocation5 + $0x1228] sm:$0xff]
    %v710 = vld [vmem:[#allocation5 + $0x1230] sm:$0xff]
    %v711 = vld [vmem:[#allocation5 + $0x1238] sm:$0xff]
    %v712 = vld [vmem:[#allocation5 + $0x1240] sm:$0xff]
    %v713 = vld [vmem:[#allocation5 + $0x1248] sm:$0xff]
    %v714 = vld [vmem:[#allocation5 + $0x1250] sm:$0xff]
    %v715 = vld [vmem:[#allocation5 + $0x1258] sm:$0xff]
    %v716 = vld [vmem:[#allocation5 + $0x1260] sm:$0xff]
    %v717 = vld [vmem:[#allocation5 + $0x1268] sm:$0xff]
    %v718 = vld [vmem:[#allocation5 + $0x1270] sm:$0xff]
    %v719 = vld [vmem:[#allocation5 + $0x1278] sm:$0xff]
    %v720 = vld [vmem:[#allocation5 + $0x1280] sm:$0xff]
    %v721 = vld [vmem:[#allocation5 + $0x1288] sm:$0xff]
    %v722 = vld [vmem:[#allocation5 + $0x1290] sm:$0xff]
    %v723 = vld [vmem:[#allocation5 + $0x1298] sm:$0xff]
    %v724 = vld [vmem:[#allocation5 + $0x12a0] sm:$0xff]
    %v725 = vld [vmem:[#allocation5 + $0x12a8] sm:$0xff]
    %v726 = vld [vmem:[#allocation5 + $0x12b0] sm:$0xff]
    %v727 = vld [vmem:[#allocation5 + $0x12b8] sm:$0xff]
    %v728 = vld [vmem:[#allocation5 + $0x12c0] sm:$0xff]
    %v729 = vld [vmem:[#allocation5 + $0x12c8] sm:$0xff]
    %v730 = vld [vmem:[#allocation5 + $0x12d0] sm:$0xff]
    %v731 = vld [vmem:[#allocation5 + $0x12d8] sm:$0xff]
    %v732 = vld [vmem:[#allocation5 + $0x12e0] sm:$0xff]
    %v733 = vld [vmem:[#allocation5 + $0x12e8] sm:$0xff]
    %v734 = vld [vmem:[#allocation5 + $0x12f0] sm:$0xff]
    %v735 = vld [vmem:[#allocation5 + $0x12f8] sm:$0xff]
    %v736 = vld [vmem:[#allocation5 + $0x1300] sm:$0xff]
    %v737 = vld [vmem:[#allocation5 + $0x1308] sm:$0xff]
    %v738 = vld [vmem:[#allocation5 + $0x1310] sm:$0xff]
    %v739 = vld [vmem:[#allocation5 + $0x1318] sm:$0xff]
    %v740 = vld [vmem:[#allocation5 + $0x1320] sm:$0xff]
    %v741 = vld [vmem:[#allocation5 + $0x1328] sm:$0xff]
    %v742 = vld [vmem:[#allocation5 + $0x1330] sm:$0xff]
    %v743 = vld [vmem:[#allocation5 + $0x1338] sm:$0xff]
    %v744 = vld [vmem:[#allocation5 + $0x1340] sm:$0xff]
    %v745 = vld [vmem:[#allocation5 + $0x1348] sm:$0xff]
    %v746 = vld [vmem:[#allocation5 + $0x1350] sm:$0xff]
    %v747 = vld [vmem:[#allocation5 + $0x1358] sm:$0xff]
    %v748 = vld [vmem:[#allocation5 + $0x1360] sm:$0xff]
    %v749 = vld [vmem:[#allocation5 + $0x1368] sm:$0xff]
    %v750 = vld [vmem:[#allocation5 + $0x1370] sm:$0xff]
    %v751 = vld [vmem:[#allocation5 + $0x1378] sm:$0xff]
    %v752 = vld [vmem:[#allocation5 + $0x1380] sm:$0xff]
    %v753 = vld [vmem:[#allocation5 + $0x1388] sm:$0xff]
    %v754 = vld [vmem:[#allocation5 + $0x1390] sm:$0xff]
    %v755 = vld [vmem:[#allocation5 + $0x1398] sm:$0xff]
    %v756 = vld [vmem:[#allocation5 + $0x13a0] sm:$0xff]
    %v757 = vld [vmem:[#allocation5 + $0x13a8] sm:$0xff]
    %v758 = vld [vmem:[#allocation5 + $0x13b0] sm:$0xff]
    %v759 = vld [vmem:[#allocation5 + $0x13b8] sm:$0xff]
    %v760 = vld [vmem:[#allocation5 + $0x13c0] sm:$0xff]
    %v761 = vld [vmem:[#allocation5 + $0x13c8] sm:$0xff]
    %v762 = vld [vmem:[#allocation5 + $0x13d0] sm:$0xff]
    %v763 = vld [vmem:[#allocation5 + $0x13d8] sm:$0xff]
    %v764 = vld [vmem:[#allocation5 + $0x13e0] sm:$0xff]
    %v765 = vld [vmem:[#allocation5 + $0x13e8] sm:$0xff]
    %v766 = vld [vmem:[#allocation5 + $0x13f0] sm:$0xff]
    %v767 = vld [vmem:[#allocation5 + $0x13f8] sm:$0xff]
    %v768 = vld [vmem:[#allocation5 + $0x1400] sm:$0xff]
    %v769 = vld [vmem:[#allocation5 + $0x1408] sm:$0xff]
    %v770 = vld [vmem:[#allocation5 + $0x1410] sm:$0xff]
    %v771 = vld [vmem:[#allocation5 + $0x1418] sm:$0xff]
    %v772 = vld [vmem:[#allocation5 + $0x1420] sm:$0xff]
    %v773 = vld [vmem:[#allocation5 + $0x1428] sm:$0xff]
    %v774 = vld [vmem:[#allocation5 + $0x1430] sm:$0xff]
    %v775 = vld [vmem:[#allocation5 + $0x1438] sm:$0xff]
    %v776 = vld [vmem:[#allocation5 + $0x1440] sm:$0xff]
    %v777 = vld [vmem:[#allocation5 + $0x1448] sm:$0xff]
    %v778 = vld [vmem:[#allocation5 + $0x1450] sm:$0xff]
    %v779 = vld [vmem:[#allocation5 + $0x1458] sm:$0xff]
    %v780 = vld [vmem:[#allocation5 + $0x1460] sm:$0xff]
    %v781 = vld [vmem:[#allocation5 + $0x1468] sm:$0xff]
    %v782 = vld [vmem:[#allocation5 + $0x1470] sm:$0xff]
    %v783 = vld [vmem:[#allocation5 + $0x1478] sm:$0xff]
    %v784 = vld [vmem:[#allocation5 + $0x1480] sm:$0xff]
    %v785 = vld [vmem:[#allocation5 + $0x1488] sm:$0xff]
    %v786 = vld [vmem:[#allocation5 + $0x1490] sm:$0xff]
    %v787 = vld [vmem:[#allocation5 + $0x1498] sm:$0xff]
    %v788 = vld [vmem:[#allocation5 + $0x14a0] sm:$0xff]
    %v789 = vld [vmem:[#allocation5 + $0x14a8] sm:$0xff]
    %v790 = vld [vmem:[#allocation5 + $0x14b0] sm:$0xff]
    %v791 = vld [vmem:[#allocation5 + $0x14b8] sm:$0xff]
    %v792 = vld [vmem:[#allocation5 + $0x14c0] sm:$0xff]
    %v793 = vld [vmem:[#allocation5 + $0x14c8] sm:$0xff]
    %v794 = vld [vmem:[#allocation5 + $0x14d0] sm:$0xff]
    %v795 = vld [vmem:[#allocation5 + $0x14d8] sm:$0xff]
    %v796 = vld [vmem:[#allocation5 + $0x14e0] sm:$0xff]
    %v797 = vld [vmem:[#allocation5 + $0x14e8] sm:$0xff]
    %v798 = vld [vmem:[#allocation5 + $0x14f0] sm:$0xff]
    %v799 = vld [vmem:[#allocation5 + $0x14f8] sm:$0xff]
    %v800 = vld [vmem:[#allocation5 + $0x1500] sm:$0xff]
    %v801 = vld [vmem:[#allocation5 + $0x1508] sm:$0xff]
    %v802 = vld [vmem:[#allocation5 + $0x1510] sm:$0xff]
    %v803 = vld [vmem:[#allocation5 + $0x1518] sm:$0xff]
    %v804 = vld [vmem:[#allocation5 + $0x1520] sm:$0xff]
    %v805 = vld [vmem:[#allocation5 + $0x1528] sm:$0xff]
    %v806 = vld [vmem:[#allocation5 + $0x1530] sm:$0xff]
    %v807 = vld [vmem:[#allocation5 + $0x1538] sm:$0xff]
    %v808 = vld [vmem:[#allocation5 + $0x1540] sm:$0xff]
    %v809 = vld [vmem:[#allocation5 + $0x1548] sm:$0xff]
    %v810 = vld [vmem:[#allocation5 + $0x1550] sm:$0xff]
    %v811 = vld [vmem:[#allocation5 + $0x1558] sm:$0xff]
    %v812 = vld [vmem:[#allocation5 + $0x1560] sm:$0xff]
    %v813 = vld [vmem:[#allocation5 + $0x1568] sm:$0xff]
    %v814 = vld [vmem:[#allocation5 + $0x1570] sm:$0xff]
    %v815 = vld [vmem:[#allocation5 + $0x1578] sm:$0xff]
    %v816 = vld [vmem:[#allocation5 + $0x1580] sm:$0xff]
    %v817 = vld [vmem:[#allocation5 + $0x1588] sm:$0xff]
    %v818 = vld [vmem:[#allocation5 + $0x1590] sm:$0xff]
    %v819 = vld [vmem:[#allocation5 + $0x1598] sm:$0xff]
    %v820 = vld [vmem:[#allocation5 + $0x15a0] sm:$0xff]
    %v821 = vld [vmem:[#allocation5 + $0x15a8] sm:$0xff]
    %v822 = vld [vmem:[#allocation5 + $0x15b0] sm:$0xff]
    %v823 = vld [vmem:[#allocation5 + $0x15b8] sm:$0xff]
    %v824 = vld [vmem:[#allocation5 + $0x15c0] sm:$0xff]
    %v825 = vld [vmem:[#allocation5 + $0x15c8] sm:$0xff]
    %v826 = vld [vmem:[#allocation5 + $0x15d0] sm:$0xff]
    %v827 = vld [vmem:[#allocation5 + $0x15d8] sm:$0xff]
    %v828 = vld [vmem:[#allocation5 + $0x15e0] sm:$0xff]
    %v829 = vld [vmem:[#allocation5 + $0x15e8] sm:$0xff]
    %v830 = vld [vmem:[#allocation5 + $0x15f0] sm:$0xff]
    %v831 = vld [vmem:[#allocation5 + $0x15f8] sm:$0xff]
    %v832 = vld [vmem:[#allocation5 + $0x1600] sm:$0xff]
    %v833 = vld [vmem:[#allocation5 + $0x1608] sm:$0xff]
    %v834 = vld [vmem:[#allocation5 + $0x1610] sm:$0xff]
    %v835 = vld [vmem:[#allocation5 + $0x1618] sm:$0xff]
    %v836 = vld [vmem:[#allocation5 + $0x1620] sm:$0xff]
    %v837 = vld [vmem:[#allocation5 + $0x1628] sm:$0xff]
    %v838 = vld [vmem:[#allocation5 + $0x1630] sm:$0xff]
    %v839 = vld [vmem:[#allocation5 + $0x1638] sm:$0xff]
    %v840 = vld [vmem:[#allocation5 + $0x1640] sm:$0xff]
    %v841 = vld [vmem:[#allocation5 + $0x1648] sm:$0xff]
    %v842 = vld [vmem:[#allocation5 + $0x1650] sm:$0xff]
    %v843 = vld [vmem:[#allocation5 + $0x1658] sm:$0xff]
    %v844 = vld [vmem:[#allocation5 + $0x1660] sm:$0xff]
    %v845 = vld [vmem:[#allocation5 + $0x1668] sm:$0xff]
    %v846 = vld [vmem:[#allocation5 + $0x1670] sm:$0xff]
    %v847 = vld [vmem:[#allocation5 + $0x1678] sm:$0xff]
    %v848 = vld [vmem:[#allocation5 + $0x1680] sm:$0xff]
    %v849 = vld [vmem:[#allocation5 + $0x1688] sm:$0xff]
    %v850 = vld [vmem:[#allocation5 + $0x1690] sm:$0xff]
    %v851 = vld [vmem:[#allocation5 + $0x1698] sm:$0xff]
    %v852 = vld [vmem:[#allocation5 + $0x16a0] sm:$0xff]
    %v853 = vld [vmem:[#allocation5 + $0x16a8] sm:$0xff]
    %v854 = vld [vmem:[#allocation5 + $0x16b0] sm:$0xff]
    %v855 = vld [vmem:[#allocation5 + $0x16b8] sm:$0xff]
    %v856 = vld [vmem:[#allocation5 + $0x16c0] sm:$0xff]
    %v857 = vld [vmem:[#allocation5 + $0x16c8] sm:$0xff]
    %v858 = vld [vmem:[#allocation5 + $0x16d0] sm:$0xff]
    %v859 = vld [vmem:[#allocation5 + $0x16d8] sm:$0xff]
    %v860 = vld [vmem:[#allocation5 + $0x16e0] sm:$0xff]
    %v861 = vld [vmem:[#allocation5 + $0x16e8] sm:$0xff]
    %v862 = vld [vmem:[#allocation5 + $0x16f0] sm:$0xff]
    %v863 = vld [vmem:[#allocation5 + $0x16f8] sm:$0xff]
    %v864 = vld [vmem:[#allocation5 + $0x1700] sm:$0xff]
    %v865 = vld [vmem:[#allocation5 + $0x1708] sm:$0xff]
    %v866 = vld [vmem:[#allocation5 + $0x1710] sm:$0xff]
    %v867 = vld [vmem:[#allocation5 + $0x1718] sm:$0xff]
    %v868 = vld [vmem:[#allocation5 + $0x1720] sm:$0xff]
    %v869 = vld [vmem:[#allocation5 + $0x1728] sm:$0xff]
    %v870 = vld [vmem:[#allocation5 + $0x1730] sm:$0xff]
    %v871 = vld [vmem:[#allocation5 + $0x1738] sm:$0xff]
    %v872 = vld [vmem:[#allocation5 + $0x1740] sm:$0xff]
    %v873 = vld [vmem:[#allocation5 + $0x1748] sm:$0xff]
    %v874 = vld [vmem:[#allocation5 + $0x1750] sm:$0xff]
    %v875 = vld [vmem:[#allocation5 + $0x1758] sm:$0xff]
    %v876 = vld [vmem:[#allocation5 + $0x1760] sm:$0xff]
    %v877 = vld [vmem:[#allocation5 + $0x1768] sm:$0xff]
    %v878 = vld [vmem:[#allocation5 + $0x1770] sm:$0xff]
    %v879 = vld [vmem:[#allocation5 + $0x1778] sm:$0xff]
    %v880 = vld [vmem:[#allocation5 + $0x1780] sm:$0xff]
    %v881 = vld [vmem:[#allocation5 + $0x1788] sm:$0xff]
    %v882 = vld [vmem:[#allocation5 + $0x1790] sm:$0xff]
    %v883 = vld [vmem:[#allocation5 + $0x1798] sm:$0xff]
    %v884 = vld [vmem:[#allocation5 + $0x17a0] sm:$0xff]
    %v885 = vld [vmem:[#allocation5 + $0x17a8] sm:$0xff]
    %v886 = vld [vmem:[#allocation5 + $0x17b0] sm:$0xff]
    %v887 = vld [vmem:[#allocation5 + $0x17b8] sm:$0xff]
    %v888 = vld [vmem:[#allocation5 + $0x17c0] sm:$0xff]
    %v889 = vld [vmem:[#allocation5 + $0x17c8] sm:$0xff]
    %v890 = vld [vmem:[#allocation5 + $0x17d0] sm:$0xff]
    %v891 = vld [vmem:[#allocation5 + $0x17d8] sm:$0xff]
    %v892 = vld [vmem:[#allocation5 + $0x17e0] sm:$0xff]
    %v893 = vld [vmem:[#allocation5 + $0x17e8] sm:$0xff]
    %v894 = vld [vmem:[#allocation5 + $0x17f0] sm:$0xff]
    %v895 = vld [vmem:[#allocation5 + $0x17f8] sm:$0xff]
    %v896 = vld [vmem:[#allocation5 + $0x1800] sm:$0xff]
    %v897 = vld [vmem:[#allocation5 + $0x1808] sm:$0xff]
    %v898 = vld [vmem:[#allocation5 + $0x1810] sm:$0xff]
    %v899 = vld [vmem:[#allocation5 + $0x1818] sm:$0xff]
    %v900 = vld [vmem:[#allocation5 + $0x1820] sm:$0xff]
    %v901 = vld [vmem:[#allocation5 + $0x1828] sm:$0xff]
    %v902 = vld [vmem:[#allocation5 + $0x1830] sm:$0xff]
    %v903 = vld [vmem:[#allocation5 + $0x1838] sm:$0xff]
    %v904 = vld [vmem:[#allocation5 + $0x1840] sm:$0xff]
    %v905 = vld [vmem:[#allocation5 + $0x1848] sm:$0xff]
    %v906 = vld [vmem:[#allocation5 + $0x1850] sm:$0xff]
    %v907 = vld [vmem:[#allocation5 + $0x1858] sm:$0xff]
    %v908 = vld [vmem:[#allocation5 + $0x1860] sm:$0xff]
    %v909 = vld [vmem:[#allocation5 + $0x1868] sm:$0xff]
    %v910 = vld [vmem:[#allocation5 + $0x1870] sm:$0xff]
    %v911 = vld [vmem:[#allocation5 + $0x1878] sm:$0xff]
    %v912 = vld [vmem:[#allocation5 + $0x1880] sm:$0xff]
    %v913 = vld [vmem:[#allocation5 + $0x1888] sm:$0xff]
    %v914 = vld [vmem:[#allocation5 + $0x1890] sm:$0xff]
    %v915 = vld [vmem:[#allocation5 + $0x1898] sm:$0xff]
    %v916 = vld [vmem:[#allocation5 + $0x18a0] sm:$0xff]
    %v917 = vld [vmem:[#allocation5 + $0x18a8] sm:$0xff]
    %v918 = vld [vmem:[#allocation5 + $0x18b0] sm:$0xff]
    %v919 = vld [vmem:[#allocation5 + $0x18b8] sm:$0xff]
    %v920 = vld [vmem:[#allocation5 + $0x18c0] sm:$0xff]
    %v921 = vld [vmem:[#allocation5 + $0x18c8] sm:$0xff]
    %v922 = vld [vmem:[#allocation5 + $0x18d0] sm:$0xff]
    %v923 = vld [vmem:[#allocation5 + $0x18d8] sm:$0xff]
    %v924 = vld [vmem:[#allocation5 + $0x18e0] sm:$0xff]
    %v925 = vld [vmem:[#allocation5 + $0x18e8] sm:$0xff]
    %v926 = vld [vmem:[#allocation5 + $0x18f0] sm:$0xff]
    %v927 = vld [vmem:[#allocation5 + $0x18f8] sm:$0xff]
    %v928 = vld [vmem:[#allocation5 + $0x1900] sm:$0xff]
    %v929 = vld [vmem:[#allocation5 + $0x1908] sm:$0xff]
    %v930 = vld [vmem:[#allocation5 + $0x1910] sm:$0xff]
    %v931 = vld [vmem:[#allocation5 + $0x1918] sm:$0xff]
    %v932 = vld [vmem:[#allocation5 + $0x1920] sm:$0xff]
    %v933 = vld [vmem:[#allocation5 + $0x1928] sm:$0xff]
    %v934 = vld [vmem:[#allocation5 + $0x1930] sm:$0xff]
    %v935 = vld [vmem:[#allocation5 + $0x1938] sm:$0xff]
    %v936 = vld [vmem:[#allocation5 + $0x1940] sm:$0xff]
    %v937 = vld [vmem:[#allocation5 + $0x1948] sm:$0xff]
    %v938 = vld [vmem:[#allocation5 + $0x1950] sm:$0xff]
    %v939 = vld [vmem:[#allocation5 + $0x1958] sm:$0xff]
    %v940 = vld [vmem:[#allocation5 + $0x1960] sm:$0xff]
    %v941 = vld [vmem:[#allocation5 + $0x1968] sm:$0xff]
    %v942 = vld [vmem:[#allocation5 + $0x1970] sm:$0xff]
    %v943 = vld [vmem:[#allocation5 + $0x1978] sm:$0xff]
    %v944 = vld [vmem:[#allocation5 + $0x1980] sm:$0xff]
    %v945 = vld [vmem:[#allocation5 + $0x1988] sm:$0xff]
    %v946 = vld [vmem:[#allocation5 + $0x1990] sm:$0xff]
    %v947 = vld [vmem:[#allocation5 + $0x1998] sm:$0xff]
    %v948 = vld [vmem:[#allocation5 + $0x19a0] sm:$0xff]
    %v949 = vld [vmem:[#allocation5 + $0x19a8] sm:$0xff]
    %v950 = vld [vmem:[#allocation5 + $0x19b0] sm:$0xff]
    %v951 = vld [vmem:[#allocation5 + $0x19b8] sm:$0xff]
    %v952 = vld [vmem:[#allocation5 + $0x19c0] sm:$0xff]
    %v953 = vld [vmem:[#allocation5 + $0x19c8] sm:$0xff]
    %v954 = vld [vmem:[#allocation5 + $0x19d0] sm:$0xff]
    %v955 = vld [vmem:[#allocation5 + $0x19d8] sm:$0xff]
    %v956 = vld [vmem:[#allocation5 + $0x19e0] sm:$0xff]
    %v957 = vld [vmem:[#allocation5 + $0x19e8] sm:$0xff]
    %v958 = vld [vmem:[#allocation5 + $0x19f0] sm:$0xff]
    %v959 = vld [vmem:[#allocation5 + $0x19f8] sm:$0xff]
    %v960 = vld [vmem:[#allocation5 + $0x1a00] sm:$0xff]
    %v961 = vld [vmem:[#allocation5 + $0x1a08] sm:$0xff]
    %v962 = vld [vmem:[#allocation5 + $0x1a10] sm:$0xff]
    %v963 = vld [vmem:[#allocation5 + $0x1a18] sm:$0xff]
    %v964 = vld [vmem:[#allocation5 + $0x1a20] sm:$0xff]
    %v965 = vld [vmem:[#allocation5 + $0x1a28] sm:$0xff]
    %v966 = vld [vmem:[#allocation5 + $0x1a30] sm:$0xff]
    %v967 = vld [vmem:[#allocation5 + $0x1a38] sm:$0xff]
    %v968 = vld [vmem:[#allocation5 + $0x1a40] sm:$0xff]
    %v969 = vld [vmem:[#allocation5 + $0x1a48] sm:$0xff]
    %v970 = vld [vmem:[#allocation5 + $0x1a50] sm:$0xff]
    %v971 = vld [vmem:[#allocation5 + $0x1a58] sm:$0xff]
    %v972 = vld [vmem:[#allocation5 + $0x1a60] sm:$0xff]
    %v973 = vld [vmem:[#allocation5 + $0x1a68] sm:$0xff]
    %v974 = vld [vmem:[#allocation5 + $0x1a70] sm:$0xff]
    %v975 = vld [vmem:[#allocation5 + $0x1a78] sm:$0xff]
    %v976 = vld [vmem:[#allocation5 + $0x1a80] sm:$0xff]
    %v977 = vld [vmem:[#allocation5 + $0x1a88] sm:$0xff]
    %v978 = vld [vmem:[#allocation5 + $0x1a90] sm:$0xff]
    %v979 = vld [vmem:[#allocation5 + $0x1a98] sm:$0xff]
    %v980 = vld [vmem:[#allocation5 + $0x1aa0] sm:$0xff]
    %v981 = vld [vmem:[#allocation5 + $0x1aa8] sm:$0xff]
    %v982 = vld [vmem:[#allocation5 + $0x1ab0] sm:$0xff]
    %v983 = vld [vmem:[#allocation5 + $0x1ab8] sm:$0xff]
    %v984 = vld [vmem:[#allocation5 + $0x1ac0] sm:$0xff]
    %v985 = vld [vmem:[#allocation5 + $0x1ac8] sm:$0xff]
    %v986 = vld [vmem:[#allocation5 + $0x1ad0] sm:$0xff]
    %v987 = vld [vmem:[#allocation5 + $0x1ad8] sm:$0xff]
    %v988 = vld [vmem:[#allocation5 + $0x1ae0] sm:$0xff]
    %v989 = vld [vmem:[#allocation5 + $0x1ae8] sm:$0xff]
    %v990 = vld [vmem:[#allocation5 + $0x1af0] sm:$0xff]
    %v991 = vld [vmem:[#allocation5 + $0x1af8] sm:$0xff]
    %v992 = vld [vmem:[#allocation7] sm:$0x3]
    %v994 = vlaneseq
    %v995 = vshrl.u32 %v994, 7
    %v996 = vsub.s32 0, %v995
    %v997 = vrot.slane %v992, %v996
    %v998 = vlaneseq
    %v999 = vshrl.u32 %v998, 7
    %v1000 = vsub.s32 1, %v999
    %v1001 = vrot.slane %v992, %v1000
    %v1017 = vcombine.high %v114, %v114
    %v1018 = vcombine.high %v115, %v115
    %v1019 = vcombine.high %v116, %v116
    %v1020 = vcombine.high %v117, %v117
    %v1021 = vcombine.high %v118, %v118
    %v1022 = vcombine.high %v119, %v119
    %v1023 = vcombine.high %v120, %v120
    %v1024 = vcombine.high %v121, %v121
    %v1025 = vcombine.high %v122, %v122
    %v1026 = vcombine.high %v123, %v123
    %v1027 = vcombine.high %v124, %v124
    %v1028 = vcombine.high %v125, %v125
    %v1029 = vcombine.high %v126, %v126
    %1043 = vmatprep.subr.mxu0 %v129
    %1044 = vmatpush1.msra.mxu0 %v128
    %1045 = vmatprep.subr.mxu0 %v131
    %1046 = vmatpush1.msra.mxu0 %v130
    %1047 = vmatprep.subr.mxu0 %v133
    %1048 = vmatpush1.msra.mxu0 %v132
    %1049 = vmatprep.subr.mxu0 %v135
    %1050 = vmatpush1.msra.mxu0 %v134
    %1051 = vmatprep.subr.mxu0 %v137
    %1052 = vmatpush1.msra.mxu0 %v136
    %1053 = vmatprep.subr.mxu0 %v139
    %1054 = vmatpush1.msra.mxu0 %v138
    %1055 = vmatprep.subr.mxu0 %v141
    %1056 = vmatpush1.msra.mxu0 %v140
    %1057 = vmatprep.subr.mxu0 %v143
    %1058 = vmatpush1.msra.mxu0 %v142
    %1059 = vmatprep.subr.mxu0 %v145
    %1060 = vmatpush1.msra.mxu0 %v144
    %1061 = vmatprep.subr.mxu0 %v147
    %1062 = vmatpush1.msra.mxu0 %v146
    %1063 = vmatprep.subr.mxu0 %v149
    %1064 = vmatpush1.msra.mxu0 %v148
    %1065 = vmatprep.subr.mxu0 %v151
    %1066 = vmatpush1.msra.mxu0 %v150
    %1067 = vmatprep.subr.mxu0 %v153
    %1068 = vmatpush1.msra.mxu0 %v152
    %1069 = vmatprep.subr.mxu0 %v155
    %1070 = vmatpush1.msra.mxu0 %v154
    %1071 = vmatprep.subr.mxu0 %v157
    %1072 = vmatpush1.msra.mxu0 %v156
    %1073 = vmatprep.subr.mxu0 %v159
    %1074 = vmatpush1.msra.mxu0 %v158
    %1075 = vmatprep.subr.mxu0 %v161
    %1076 = vmatpush1.msra.mxu0 %v160
    %1077 = vmatprep.subr.mxu0 %v163
    %1078 = vmatpush1.msra.mxu0 %v162
    %1079 = vmatprep.subr.mxu0 %v165
    %1080 = vmatpush1.msra.mxu0 %v164
    %1081 = vmatprep.subr.mxu0 %v167
    %1082 = vmatpush1.msra.mxu0 %v166
    %1083 = vmatprep.subr.mxu0 %v169
    %1084 = vmatpush1.msra.mxu0 %v168
    %1085 = vmatprep.subr.mxu0 %v171
    %1086 = vmatpush1.msra.mxu0 %v170
    %1087 = vmatprep.subr.mxu0 %v173
    %1088 = vmatpush1.msra.mxu0 %v172
    %1089 = vmatprep.subr.mxu0 %v175
    %1090 = vmatpush1.msra.mxu0 %v174
    %1091 = vmatprep.subr.mxu0 %v177
    %1092 = vmatpush1.msra.mxu0 %v176
    %1093 = vmatprep.subr.mxu0 %v179
    %1094 = vmatpush1.msra.mxu0 %v178
    %1095 = vmatprep.subr.mxu0 %v181
    %1096 = vmatpush1.msra.mxu0 %v180
    %1097 = vmatprep.subr.mxu0 %v183
    %1098 = vmatpush1.msra.mxu0 %v182
    %1099 = vmatprep.subr.mxu0 %v185
    %1100 = vmatpush1.msra.mxu0 %v184
    %1101 = vmatprep.subr.mxu0 %v187
    %1102 = vmatpush1.msra.mxu0 %v186
    %1103 = vmatprep.subr.mxu0 %v189
    %1104 = vmatpush1.msra.mxu0 %v188
    %1105 = vmatprep.subr.mxu0 %v191
    %1106 = vmatpush1.msra.mxu0 %v190
    %1107 = vmatprep.mubr.f32.mxu0 %v1017
    %1108 = vmatmul.mubr.f32.gmra.mrb[0].mxu0 %v114
    %v1109 = vpop.f32.mrb[0].mxu0
    %v1110 = vadd.f32 %v997, %v1109
    %v1111 = vpop.f32.mrb[0].mxu0
    %v1112 = vadd.f32 %v1001, %v1111
    %1113 = vdwg.mxu0
    %1114 = vmatprep.subr.mxu0 %v193
    %1115 = vmatpush1.msra.mxu0 %v192
    %1116 = vmatprep.subr.mxu0 %v195
    %1117 = vmatpush1.msra.mxu0 %v194
    %1118 = vmatprep.subr.mxu0 %v197
    %1119 = vmatpush1.msra.mxu0 %v196
    %1120 = vmatprep.subr.mxu0 %v199
    %1121 = vmatpush1.msra.mxu0 %v198
    %1122 = vmatprep.subr.mxu0 %v201
    %1123 = vmatpush1.msra.mxu0 %v200
    %1124 = vmatprep.subr.mxu0 %v203
    %1125 = vmatpush1.msra.mxu0 %v202
    %1126 = vmatprep.subr.mxu0 %v205
    %1127 = vmatpush1.msra.mxu0 %v204
    %1128 = vmatprep.subr.mxu0 %v207
    %1129 = vmatpush1.msra.mxu0 %v206
    %1130 = vmatprep.subr.mxu0 %v209
    %1131 = vmatpush1.msra.mxu0 %v208
    %1132 = vmatprep.subr.mxu0 %v211
    %1133 = vmatpush1.msra.mxu0 %v210
    %1134 = vmatprep.subr.mxu0 %v213
    %1135 = vmatpush1.msra.mxu0 %v212
    %1136 = vmatprep.subr.mxu0 %v215
    %1137 = vmatpush1.msra.mxu0 %v214
    %1138 = vmatprep.subr.mxu0 %v217
    %1139 = vmatpush1.msra.mxu0 %v216
    %1140 = vmatprep.subr.mxu0 %v219
    %1141 = vmatpush1.msra.mxu0 %v218
    %1142 = vmatprep.subr.mxu0 %v221
    %1143 = vmatpush1.msra.mxu0 %v220
    %1144 = vmatprep.subr.mxu0 %v223
    %1145 = vmatpush1.msra.mxu0 %v222
    %1146 = vmatprep.subr.mxu0 %v225
    %1147 = vmatpush1.msra.mxu0 %v224
    %1148 = vmatprep.subr.mxu0 %v227
    %1149 = vmatpush1.msra.mxu0 %v226
    %1150 = vmatprep.subr.mxu0 %v229
    %1151 = vmatpush1.msra.mxu0 %v228
    %1152 = vmatprep.subr.mxu0 %v231
    %1153 = vmatpush1.msra.mxu0 %v230
    %1154 = vmatprep.subr.mxu0 %v233
    %1155 = vmatpush1.msra.mxu0 %v232
    %1156 = vmatprep.subr.mxu0 %v235
    %1157 = vmatpush1.msra.mxu0 %v234
    %1158 = vmatprep.subr.mxu0 %v237
    %1159 = vmatpush1.msra.mxu0 %v236
    %1160 = vmatprep.subr.mxu0 %v239
    %1161 = vmatpush1.msra.mxu0 %v238
    %1162 = vmatprep.subr.mxu0 %v241
    %1163 = vmatpush1.msra.mxu0 %v240
    %1164 = vmatprep.subr.mxu0 %v243
    %1165 = vmatpush1.msra.mxu0 %v242
    %1166 = vmatprep.subr.mxu0 %v245
    %1167 = vmatpush1.msra.mxu0 %v244
    %1168 = vmatprep.subr.mxu0 %v247
    %1169 = vmatpush1.msra.mxu0 %v246
    %1170 = vmatprep.subr.mxu0 %v249
    %1171 = vmatpush1.msra.mxu0 %v248
    %1172 = vmatprep.subr.mxu0 %v251
    %1173 = vmatpush1.msra.mxu0 %v250
    %1174 = vmatprep.subr.mxu0 %v253
    %1175 = vmatpush1.msra.mxu0 %v252
    %1176 = vmatprep.subr.mxu0 %v255
    %1177 = vmatpush1.msra.mxu0 %v254
    %1178 = vmatprep.mubr.f32.mxu0 %v1018
    %1179 = vmatmul.mubr.f32.gmra.mrb[0].mxu0 %v115
    %v1180 = vpop.f32.mrb[0].mxu0
    %v1181 = vadd.f32 %v1110, %v1180
    %v1182 = vpop.f32.mrb[0].mxu0
    %v1183 = vadd.f32 %v1112, %v1182
    %1184 = vdwg.mxu0
    %1185 = vmatprep.subr.mxu0 %v257
    %1186 = vmatpush1.msra.mxu0 %v256
    %1187 = vmatprep.subr.mxu0 %v259
    %1188 = vmatpush1.msra.mxu0 %v258
    %1189 = vmatprep.subr.mxu0 %v261
    %1190 = vmatpush1.msra.mxu0 %v260
    %1191 = vmatprep.subr.mxu0 %v263
    %1192 = vmatpush1.msra.mxu0 %v262
    %1193 = vmatprep.subr.mxu0 %v265
    %1194 = vmatpush1.msra.mxu0 %v264
    %1195 = vmatprep.subr.mxu0 %v267
    %1196 = vmatpush1.msra.mxu0 %v266
    %1197 = vmatprep.subr.mxu0 %v269
    %1198 = vmatpush1.msra.mxu0 %v268
    %1199 = vmatprep.subr.mxu0 %v271
    %1200 = vmatpush1.msra.mxu0 %v270
    %1201 = vmatprep.subr.mxu0 %v273
    %1202 = vmatpush1.msra.mxu0 %v272
    %1203 = vmatprep.subr.mxu0 %v275
    %1204 = vmatpush1.msra.mxu0 %v274
    %1205 = vmatprep.subr.mxu0 %v277
    %1206 = vmatpush1.msra.mxu0 %v276
    %1207 = vmatprep.subr.mxu0 %v279
    %1208 = vmatpush1.msra.mxu0 %v278
    %1209 = vmatprep.subr.mxu0 %v281
    %1210 = vmatpush1.msra.mxu0 %v280
    %1211 = vmatprep.subr.mxu0 %v283
    %1212 = vmatpush1.msra.mxu0 %v282
    %1213 = vmatprep.subr.mxu0 %v285
    %1214 = vmatpush1.msra.mxu0 %v284
    %1215 = vmatprep.subr.mxu0 %v287
    %1216 = vmatpush1.msra.mxu0 %v286
    %1217 = vmatprep.subr.mxu0 %v289
    %1218 = vmatpush1.msra.mxu0 %v288
    %1219 = vmatprep.subr.mxu0 %v291
    %1220 = vmatpush1.msra.mxu0 %v290
    %1221 = vmatprep.subr.mxu0 %v293
    %1222 = vmatpush1.msra.mxu0 %v292
    %1223 = vmatprep.subr.mxu0 %v295
    %1224 = vmatpush1.msra.mxu0 %v294
    %1225 = vmatprep.subr.mxu0 %v297
    %1226 = vmatpush1.msra.mxu0 %v296
    %1227 = vmatprep.subr.mxu0 %v299
    %1228 = vmatpush1.msra.mxu0 %v298
    %1229 = vmatprep.subr.mxu0 %v301
    %1230 = vmatpush1.msra.mxu0 %v300
    %1231 = vmatprep.subr.mxu0 %v303
    %1232 = vmatpush1.msra.mxu0 %v302
    %1233 = vmatprep.subr.mxu0 %v305
    %1234 = vmatpush1.msra.mxu0 %v304
    %1235 = vmatprep.subr.mxu0 %v307
    %1236 = vmatpush1.msra.mxu0 %v306
    %1237 = vmatprep.subr.mxu0 %v309
    %1238 = vmatpush1.msra.mxu0 %v308
    %1239 = vmatprep.subr.mxu0 %v311
    %1240 = vmatpush1.msra.mxu0 %v310
    %1241 = vmatprep.subr.mxu0 %v313
    %1242 = vmatpush1.msra.mxu0 %v312
    %1243 = vmatprep.subr.mxu0 %v315
    %1244 = vmatpush1.msra.mxu0 %v314
    %1245 = vmatprep.subr.mxu0 %v317
    %1246 = vmatpush1.msra.mxu0 %v316
    %1247 = vmatprep.subr.mxu0 %v319
    %1248 = vmatpush1.msra.mxu0 %v318
    %1249 = vmatprep.mubr.f32.mxu0 %v1019
    %1250 = vmatmul.mubr.f32.gmra.mrb[0].mxu0 %v116
    %v1251 = vpop.f32.mrb[0].mxu0
    %v1252 = vadd.f32 %v1181, %v1251
    %v1253 = vpop.f32.mrb[0].mxu0
    %v1254 = vadd.f32 %v1183, %v1253
    %1255 = vdwg.mxu0
    %1256 = vmatprep.subr.mxu0 %v321
    %1257 = vmatpush1.msra.mxu0 %v320
    %1258 = vmatprep.subr.mxu0 %v323
    %1259 = vmatpush1.msra.mxu0 %v322
    %1260 = vmatprep.subr.mxu0 %v325
    %1261 = vmatpush1.msra.mxu0 %v324
    %1262 = vmatprep.subr.mxu0 %v327
    %1263 = vmatpush1.msra.mxu0 %v326
    %1264 = vmatprep.subr.mxu0 %v329
    %1265 = vmatpush1.msra.mxu0 %v328
    %1266 = vmatprep.subr.mxu0 %v331
    %1267 = vmatpush1.msra.mxu0 %v330
    %1268 = vmatprep.subr.mxu0 %v333
    %1269 = vmatpush1.msra.mxu0 %v332
    %1270 = vmatprep.subr.mxu0 %v335
    %1271 = vmatpush1.msra.mxu0 %v334
    %1272 = vmatprep.subr.mxu0 %v337
    %1273 = vmatpush1.msra.mxu0 %v336
    %1274 = vmatprep.subr.mxu0 %v339
    %1275 = vmatpush1.msra.mxu0 %v338
    %1276 = vmatprep.subr.mxu0 %v341
    %1277 = vmatpush1.msra.mxu0 %v340
    %1278 = vmatprep.subr.mxu0 %v343
    %1279 = vmatpush1.msra.mxu0 %v342
    %1280 = vmatprep.subr.mxu0 %v345
    %1281 = vmatpush1.msra.mxu0 %v344
    %1282 = vmatprep.subr.mxu0 %v347
    %1283 = vmatpush1.msra.mxu0 %v346
    %1284 = vmatprep.subr.mxu0 %v349
    %1285 = vmatpush1.msra.mxu0 %v348
    %1286 = vmatprep.subr.mxu0 %v351
    %1287 = vmatpush1.msra.mxu0 %v350
    %1288 = vmatprep.subr.mxu0 %v353
    %1289 = vmatpush1.msra.mxu0 %v352
    %1290 = vmatprep.subr.mxu0 %v355
    %1291 = vmatpush1.msra.mxu0 %v354
    %1292 = vmatprep.subr.mxu0 %v357
    %1293 = vmatpush1.msra.mxu0 %v356
    %1294 = vmatprep.subr.mxu0 %v359
    %1295 = vmatpush1.msra.mxu0 %v358
    %1296 = vmatprep.subr.mxu0 %v361
    %1297 = vmatpush1.msra.mxu0 %v360
    %1298 = vmatprep.subr.mxu0 %v363
    %1299 = vmatpush1.msra.mxu0 %v362
    %1300 = vmatprep.subr.mxu0 %v365
    %1301 = vmatpush1.msra.mxu0 %v364
    %1302 = vmatprep.subr.mxu0 %v367
    %1303 = vmatpush1.msra.mxu0 %v366
    %1304 = vmatprep.subr.mxu0 %v369
    %1305 = vmatpush1.msra.mxu0 %v368
    %1306 = vmatprep.subr.mxu0 %v371
    %1307 = vmatpush1.msra.mxu0 %v370
    %1308 = vmatprep.subr.mxu0 %v373
    %1309 = vmatpush1.msra.mxu0 %v372
    %1310 = vmatprep.subr.mxu0 %v375
    %1311 = vmatpush1.msra.mxu0 %v374
    %1312 = vmatprep.subr.mxu0 %v377
    %1313 = vmatpush1.msra.mxu0 %v376
    %1314 = vmatprep.subr.mxu0 %v379
    %1315 = vmatpush1.msra.mxu0 %v378
    %1316 = vmatprep.subr.mxu0 %v381
    %1317 = vmatpush1.msra.mxu0 %v380
    %1318 = vmatprep.subr.mxu0 %v383
    %1319 = vmatpush1.msra.mxu0 %v382
    %1320 = vmatprep.mubr.f32.mxu0 %v1020
    %1321 = vmatmul.mubr.f32.gmra.mrb[0].mxu0 %v117
    %v1322 = vpop.f32.mrb[0].mxu0
    %v1323 = vadd.f32 %v1252, %v1322
    %v1324 = vpop.f32.mrb[0].mxu0
    %v1325 = vadd.f32 %v1254, %v1324
    %1326 = vdwg.mxu0
    %1327 = vmatprep.subr.mxu0 %v385
    %1328 = vmatpush1.msra.mxu0 %v384
    %1329 = vmatprep.subr.mxu0 %v387
    %1330 = vmatpush1.msra.mxu0 %v386
    %1331 = vmatprep.subr.mxu0 %v389
    %1332 = vmatpush1.msra.mxu0 %v388
    %1333 = vmatprep.subr.mxu0 %v391
    %1334 = vmatpush1.msra.mxu0 %v390
    %1335 = vmatprep.subr.mxu0 %v393
    %1336 = vmatpush1.msra.mxu0 %v392
    %1337 = vmatprep.subr.mxu0 %v395
    %1338 = vmatpush1.msra.mxu0 %v394
    %1339 = vmatprep.subr.mxu0 %v397
    %1340 = vmatpush1.msra.mxu0 %v396
    %1341 = vmatprep.subr.mxu0 %v399
    %1342 = vmatpush1.msra.mxu0 %v398
    %1343 = vmatprep.subr.mxu0 %v401
    %1344 = vmatpush1.msra.mxu0 %v400
    %1345 = vmatprep.subr.mxu0 %v403
    %1346 = vmatpush1.msra.mxu0 %v402
    %1347 = vmatprep.subr.mxu0 %v405
    %1348 = vmatpush1.msra.mxu0 %v404
    %1349 = vmatprep.subr.mxu0 %v407
    %1350 = vmatpush1.msra.mxu0 %v406
    %1351 = vmatprep.subr.mxu0 %v409
    %1352 = vmatpush1.msra.mxu0 %v408
    %1353 = vmatprep.subr.mxu0 %v411
    %1354 = vmatpush1.msra.mxu0 %v410
    %1355 = vmatprep.subr.mxu0 %v413
    %1356 = vmatpush1.msra.mxu0 %v412
    %1357 = vmatprep.subr.mxu0 %v415
    %1358 = vmatpush1.msra.mxu0 %v414
    %1359 = vmatprep.subr.mxu0 %v417
    %1360 = vmatpush1.msra.mxu0 %v416
    %1361 = vmatprep.subr.mxu0 %v419
    %1362 = vmatpush1.msra.mxu0 %v418
    %1363 = vmatprep.subr.mxu0 %v421
    %1364 = vmatpush1.msra.mxu0 %v420
    %1365 = vmatprep.subr.mxu0 %v423
    %1366 = vmatpush1.msra.mxu0 %v422
    %1367 = vmatprep.subr.mxu0 %v425
    %1368 = vmatpush1.msra.mxu0 %v424
    %1369 = vmatprep.subr.mxu0 %v427
    %1370 = vmatpush1.msra.mxu0 %v426
    %1371 = vmatprep.subr.mxu0 %v429
    %1372 = vmatpush1.msra.mxu0 %v428
    %1373 = vmatprep.subr.mxu0 %v431
    %1374 = vmatpush1.msra.mxu0 %v430
    %1375 = vmatprep.subr.mxu0 %v433
    %1376 = vmatpush1.msra.mxu0 %v432
    %1377 = vmatprep.subr.mxu0 %v435
    %1378 = vmatpush1.msra.mxu0 %v434
    %1379 = vmatprep.subr.mxu0 %v437
    %1380 = vmatpush1.msra.mxu0 %v436
    %1381 = vmatprep.subr.mxu0 %v439
    %1382 = vmatpush1.msra.mxu0 %v438
    %1383 = vmatprep.subr.mxu0 %v441
    %1384 = vmatpush1.msra.mxu0 %v440
    %1385 = vmatprep.subr.mxu0 %v443
    %1386 = vmatpush1.msra.mxu0 %v442
    %1387 = vmatprep.subr.mxu0 %v445
    %1388 = vmatpush1.msra.mxu0 %v444
    %1389 = vmatprep.subr.mxu0 %v447
    %1390 = vmatpush1.msra.mxu0 %v446
    %1391 = vmatprep.mubr.f32.mxu0 %v1021
    %1392 = vmatmul.mubr.f32.gmra.mrb[0].mxu0 %v118
    %v1393 = vpop.f32.mrb[0].mxu0
    %v1394 = vadd.f32 %v1323, %v1393
    %v1395 = vpop.f32.mrb[0].mxu0
    %v1396 = vadd.f32 %v1325, %v1395
    %1397 = vdwg.mxu0
    %1398 = vmatprep.subr.mxu0 %v449
    %1399 = vmatpush1.msra.mxu0 %v448
    %1400 = vmatprep.subr.mxu0 %v451
    %1401 = vmatpush1.msra.mxu0 %v450
    %1402 = vmatprep.subr.mxu0 %v453
    %1403 = vmatpush1.msra.mxu0 %v452
    %1404 = vmatprep.subr.mxu0 %v455
    %1405 = vmatpush1.msra.mxu0 %v454
    %1406 = vmatprep.subr.mxu0 %v457
    %1407 = vmatpush1.msra.mxu0 %v456
    %1408 = vmatprep.subr.mxu0 %v459
    %1409 = vmatpush1.msra.mxu0 %v458
    %1410 = vmatprep.subr.mxu0 %v461
    %1411 = vmatpush1.msra.mxu0 %v460
    %1412 = vmatprep.subr.mxu0 %v463
    %1413 = vmatpush1.msra.mxu0 %v462
    %1414 = vmatprep.subr.mxu0 %v465
    %1415 = vmatpush1.msra.mxu0 %v464
    %1416 = vmatprep.subr.mxu0 %v467
    %1417 = vmatpush1.msra.mxu0 %v466
    %1418 = vmatprep.subr.mxu0 %v469
    %1419 = vmatpush1.msra.mxu0 %v468
    %1420 = vmatprep.subr.mxu0 %v471
    %1421 = vmatpush1.msra.mxu0 %v470
    %1422 = vmatprep.subr.mxu0 %v473
    %1423 = vmatpush1.msra.mxu0 %v472
    %1424 = vmatprep.subr.mxu0 %v475
    %1425 = vmatpush1.msra.mxu0 %v474
    %1426 = vmatprep.subr.mxu0 %v477
    %1427 = vmatpush1.msra.mxu0 %v476
    %1428 = vmatprep.subr.mxu0 %v479
    %1429 = vmatpush1.msra.mxu0 %v478
    %1430 = vmatprep.subr.mxu0 %v481
    %1431 = vmatpush1.msra.mxu0 %v480
    %1432 = vmatprep.subr.mxu0 %v483
    %1433 = vmatpush1.msra.mxu0 %v482
    %1434 = vmatprep.subr.mxu0 %v485
    %1435 = vmatpush1.msra.mxu0 %v484
    %1436 = vmatprep.subr.mxu0 %v487
    %1437 = vmatpush1.msra.mxu0 %v486
    %1438 = vmatprep.subr.mxu0 %v489
    %1439 = vmatpush1.msra.mxu0 %v488
    %1440 = vmatprep.subr.mxu0 %v491
    %1441 = vmatpush1.msra.mxu0 %v490
    %1442 = vmatprep.subr.mxu0 %v493
    %1443 = vmatpush1.msra.mxu0 %v492
    %1444 = vmatprep.subr.mxu0 %v495
    %1445 = vmatpush1.msra.mxu0 %v494
    %1446 = vmatprep.subr.mxu0 %v497
    %1447 = vmatpush1.msra.mxu0 %v496
    %1448 = vmatprep.subr.mxu0 %v499
    %1449 = vmatpush1.msra.mxu0 %v498
    %1450 = vmatprep.subr.mxu0 %v501
    %1451 = vmatpush1.msra.mxu0 %v500
    %1452 = vmatprep.subr.mxu0 %v503
    %1453 = vmatpush1.msra.mxu0 %v502
    %1454 = vmatprep.subr.mxu0 %v505
    %1455 = vmatpush1.msra.mxu0 %v504
    %1456 = vmatprep.subr.mxu0 %v507
    %1457 = vmatpush1.msra.mxu0 %v506
    %1458 = vmatprep.subr.mxu0 %v509
    %1459 = vmatpush1.msra.mxu0 %v508
    %1460 = vmatprep.subr.mxu0 %v511
    %1461 = vmatpush1.msra.mxu0 %v510
    %1462 = vmatprep.mubr.f32.mxu0 %v1022
    %1463 = vmatmul.mubr.f32.gmra.mrb[0].mxu0 %v119
    %v1464 = vpop.f32.mrb[0].mxu0
    %v1465 = vadd.f32 %v1394, %v1464
    %v1466 = vpop.f32.mrb[0].mxu0
    %v1467 = vadd.f32 %v1396, %v1466
    %1468 = vdwg.mxu0
    %1469 = vmatprep.subr.mxu0 %v513
    %1470 = vmatpush1.msra.mxu0 %v512
    %1471 = vmatprep.subr.mxu0 %v515
    %1472 = vmatpush1.msra.mxu0 %v514
    %1473 = vmatprep.subr.mxu0 %v517
    %1474 = vmatpush1.msra.mxu0 %v516
    %1475 = vmatprep.subr.mxu0 %v519
    %1476 = vmatpush1.msra.mxu0 %v518
    %1477 = vmatprep.subr.mxu0 %v521
    %1478 = vmatpush1.msra.mxu0 %v520
    %1479 = vmatprep.subr.mxu0 %v523
    %1480 = vmatpush1.msra.mxu0 %v522
    %1481 = vmatprep.subr.mxu0 %v525
    %1482 = vmatpush1.msra.mxu0 %v524
    %1483 = vmatprep.subr.mxu0 %v527
    %1484 = vmatpush1.msra.mxu0 %v526
    %1485 = vmatprep.subr.mxu0 %v529
    %1486 = vmatpush1.msra.mxu0 %v528
    %1487 = vmatprep.subr.mxu0 %v531
    %1488 = vmatpush1.msra.mxu0 %v530
    %1489 = vmatprep.subr.mxu0 %v533
    %1490 = vmatpush1.msra.mxu0 %v532
    %1491 = vmatprep.subr.mxu0 %v535
    %1492 = vmatpush1.msra.mxu0 %v534
    %1493 = vmatprep.subr.mxu0 %v537
    %1494 = vmatpush1.msra.mxu0 %v536
    %1495 = vmatprep.subr.mxu0 %v539
    %1496 = vmatpush1.msra.mxu0 %v538
    %1497 = vmatprep.subr.mxu0 %v541
    %1498 = vmatpush1.msra.mxu0 %v540
    %1499 = vmatprep.subr.mxu0 %v543
    %1500 = vmatpush1.msra.mxu0 %v542
    %1501 = vmatprep.subr.mxu0 %v545
    %1502 = vmatpush1.msra.mxu0 %v544
    %1503 = vmatprep.subr.mxu0 %v547
    %1504 = vmatpush1.msra.mxu0 %v546
    %1505 = vmatprep.subr.mxu0 %v549
    %1506 = vmatpush1.msra.mxu0 %v548
    %1507 = vmatprep.subr.mxu0 %v551
    %1508 = vmatpush1.msra.mxu0 %v550
    %1509 = vmatprep.subr.mxu0 %v553
    %1510 = vmatpush1.msra.mxu0 %v552
    %1511 = vmatprep.subr.mxu0 %v555
    %1512 = vmatpush1.msra.mxu0 %v554
    %1513 = vmatprep.subr.mxu0 %v557
    %1514 = vmatpush1.msra.mxu0 %v556
    %1515 = vmatprep.subr.mxu0 %v559
    %1516 = vmatpush1.msra.mxu0 %v558
    %1517 = vmatprep.subr.mxu0 %v561
    %1518 = vmatpush1.msra.mxu0 %v560
    %1519 = vmatprep.subr.mxu0 %v563
    %1520 = vmatpush1.msra.mxu0 %v562
    %1521 = vmatprep.subr.mxu0 %v565
    %1522 = vmatpush1.msra.mxu0 %v564
    %1523 = vmatprep.subr.mxu0 %v567
    %1524 = vmatpush1.msra.mxu0 %v566
    %1525 = vmatprep.subr.mxu0 %v569
    %1526 = vmatpush1.msra.mxu0 %v568
    %1527 = vmatprep.subr.mxu0 %v571
    %1528 = vmatpush1.msra.mxu0 %v570
    %1529 = vmatprep.subr.mxu0 %v573
    %1530 = vmatpush1.msra.mxu0 %v572
    %1531 = vmatprep.subr.mxu0 %v575
    %1532 = vmatpush1.msra.mxu0 %v574
    %1533 = vmatprep.mubr.f32.mxu0 %v1023
    %1534 = vmatmul.mubr.f32.gmra.mrb[0].mxu0 %v120
    %v1535 = vpop.f32.mrb[0].mxu0
    %v1536 = vadd.f32 %v1465, %v1535
    %v1537 = vpop.f32.mrb[0].mxu0
    %v1538 = vadd.f32 %v1467, %v1537
    %1539 = vdwg.mxu0
    %1540 = vmatprep.subr.mxu0 %v577
    %1541 = vmatpush1.msra.mxu0 %v576
    %1542 = vmatprep.subr.mxu0 %v579
    %1543 = vmatpush1.msra.mxu0 %v578
    %1544 = vmatprep.subr.mxu0 %v581
    %1545 = vmatpush1.msra.mxu0 %v580
    %1546 = vmatprep.subr.mxu0 %v583
    %1547 = vmatpush1.msra.mxu0 %v582
    %1548 = vmatprep.subr.mxu0 %v585
    %1549 = vmatpush1.msra.mxu0 %v584
    %1550 = vmatprep.subr.mxu0 %v587
    %1551 = vmatpush1.msra.mxu0 %v586
    %1552 = vmatprep.subr.mxu0 %v589
    %1553 = vmatpush1.msra.mxu0 %v588
    %1554 = vmatprep.subr.mxu0 %v591
    %1555 = vmatpush1.msra.mxu0 %v590
    %1556 = vmatprep.subr.mxu0 %v593
    %1557 = vmatpush1.msra.mxu0 %v592
    %1558 = vmatprep.subr.mxu0 %v595
    %1559 = vmatpush1.msra.mxu0 %v594
    %1560 = vmatprep.subr.mxu0 %v597
    %1561 = vmatpush1.msra.mxu0 %v596
    %1562 = vmatprep.subr.mxu0 %v599
    %1563 = vmatpush1.msra.mxu0 %v598
    %1564 = vmatprep.subr.mxu0 %v601
    %1565 = vmatpush1.msra.mxu0 %v600
    %1566 = vmatprep.subr.mxu0 %v603
    %1567 = vmatpush1.msra.mxu0 %v602
    %1568 = vmatprep.subr.mxu0 %v605
    %1569 = vmatpush1.msra.mxu0 %v604
    %1570 = vmatprep.subr.mxu0 %v607
    %1571 = vmatpush1.msra.mxu0 %v606
    %1572 = vmatprep.subr.mxu0 %v609
    %1573 = vmatpush1.msra.mxu0 %v608
    %1574 = vmatprep.subr.mxu0 %v611
    %1575 = vmatpush1.msra.mxu0 %v610
    %1576 = vmatprep.subr.mxu0 %v613
    %1577 = vmatpush1.msra.mxu0 %v612
    %1578 = vmatprep.subr.mxu0 %v615
    %1579 = vmatpush1.msra.mxu0 %v614
    %1580 = vmatprep.subr.mxu0 %v617
    %1581 = vmatpush1.msra.mxu0 %v616
    %1582 = vmatprep.subr.mxu0 %v619
    %1583 = vmatpush1.msra.mxu0 %v618
    %1584 = vmatprep.subr.mxu0 %v621
    %1585 = vmatpush1.msra.mxu0 %v620
    %1586 = vmatprep.subr.mxu0 %v623
    %1587 = vmatpush1.msra.mxu0 %v622
    %1588 = vmatprep.subr.mxu0 %v625
    %1589 = vmatpush1.msra.mxu0 %v624
    %1590 = vmatprep.subr.mxu0 %v627
    %1591 = vmatpush1.msra.mxu0 %v626
    %1592 = vmatprep.subr.mxu0 %v629
    %1593 = vmatpush1.msra.mxu0 %v628
    %1594 = vmatprep.subr.mxu0 %v631
    %1595 = vmatpush1.msra.mxu0 %v630
    %1596 = vmatprep.subr.mxu0 %v633
    %1597 = vmatpush1.msra.mxu0 %v632
    %1598 = vmatprep.subr.mxu0 %v635
    %1599 = vmatpush1.msra.mxu0 %v634
    %1600 = vmatprep.subr.mxu0 %v637
    %1601 = vmatpush1.msra.mxu0 %v636
    %1602 = vmatprep.subr.mxu0 %v639
    %1603 = vmatpush1.msra.mxu0 %v638
    %1604 = vmatprep.mubr.f32.mxu0 %v1024
    %1605 = vmatmul.mubr.f32.gmra.mrb[0].mxu0 %v121
    %v1606 = vpop.f32.mrb[0].mxu0
    %v1607 = vadd.f32 %v1536, %v1606
    %v1608 = vpop.f32.mrb[0].mxu0
    %v1609 = vadd.f32 %v1538, %v1608
    %1610 = vdwg.mxu0
    %1611 = vmatprep.subr.mxu0 %v641
    %1612 = vmatpush1.msra.mxu0 %v640
    %1613 = vmatprep.subr.mxu0 %v643
    %1614 = vmatpush1.msra.mxu0 %v642
    %1615 = vmatprep.subr.mxu0 %v645
    %1616 = vmatpush1.msra.mxu0 %v644
    %1617 = vmatprep.subr.mxu0 %v647
    %1618 = vmatpush1.msra.mxu0 %v646
    %1619 = vmatprep.subr.mxu0 %v649
    %1620 = vmatpush1.msra.mxu0 %v648
    %1621 = vmatprep.subr.mxu0 %v651
    %1622 = vmatpush1.msra.mxu0 %v650
    %1623 = vmatprep.subr.mxu0 %v653
    %1624 = vmatpush1.msra.mxu0 %v652
    %1625 = vmatprep.subr.mxu0 %v655
    %1626 = vmatpush1.msra.mxu0 %v654
    %1627 = vmatprep.subr.mxu0 %v657
    %1628 = vmatpush1.msra.mxu0 %v656
    %1629 = vmatprep.subr.mxu0 %v659
    %1630 = vmatpush1.msra.mxu0 %v658
    %1631 = vmatprep.subr.mxu0 %v661
    %1632 = vmatpush1.msra.mxu0 %v660
    %1633 = vmatprep.subr.mxu0 %v663
    %1634 = vmatpush1.msra.mxu0 %v662
    %1635 = vmatprep.subr.mxu0 %v665
    %1636 = vmatpush1.msra.mxu0 %v664
    %1637 = vmatprep.subr.mxu0 %v667
    %1638 = vmatpush1.msra.mxu0 %v666
    %1639 = vmatprep.subr.mxu0 %v669
    %1640 = vmatpush1.msra.mxu0 %v668
    %1641 = vmatprep.subr.mxu0 %v671
    %1642 = vmatpush1.msra.mxu0 %v670
    %1643 = vmatprep.subr.mxu0 %v673
    %1644 = vmatpush1.msra.mxu0 %v672
    %1645 = vmatprep.subr.mxu0 %v675
    %1646 = vmatpush1.msra.mxu0 %v674
    %1647 = vmatprep.subr.mxu0 %v677
    %1648 = vmatpush1.msra.mxu0 %v676
    %1649 = vmatprep.subr.mxu0 %v679
    %1650 = vmatpush1.msra.mxu0 %v678
    %1651 = vmatprep.subr.mxu0 %v681
    %1652 = vmatpush1.msra.mxu0 %v680
    %1653 = vmatprep.subr.mxu0 %v683
    %1654 = vmatpush1.msra.mxu0 %v682
    %1655 = vmatprep.subr.mxu0 %v685
    %1656 = vmatpush1.msra.mxu0 %v684
    %1657 = vmatprep.subr.mxu0 %v687
    %1658 = vmatpush1.msra.mxu0 %v686
    %1659 = vmatprep.subr.mxu0 %v689
    %1660 = vmatpush1.msra.mxu0 %v688
    %1661 = vmatprep.subr.mxu0 %v691
    %1662 = vmatpush1.msra.mxu0 %v690
    %1663 = vmatprep.subr.mxu0 %v693
    %1664 = vmatpush1.msra.mxu0 %v692
    %1665 = vmatprep.subr.mxu0 %v695
    %1666 = vmatpush1.msra.mxu0 %v694
    %1667 = vmatprep.subr.mxu0 %v697
    %1668 = vmatpush1.msra.mxu0 %v696
    %1669 = vmatprep.subr.mxu0 %v699
    %1670 = vmatpush1.msra.mxu0 %v698
    %1671 = vmatprep.subr.mxu0 %v701
    %1672 = vmatpush1.msra.mxu0 %v700
    %1673 = vmatprep.subr.mxu0 %v703
    %1674 = vmatpush1.msra.mxu0 %v702
    %1675 = vmatprep.mubr.f32.mxu0 %v1025
    %1676 = vmatmul.mubr.f32.gmra.mrb[0].mxu0 %v122
    %v1677 = vpop.f32.mrb[0].mxu0
    %v1678 = vadd.f32 %v1607, %v1677
    %v1679 = vpop.f32.mrb[0].mxu0
    %v1680 = vadd.f32 %v1609, %v1679
    %1681 = vdwg.mxu0
    %1682 = vmatprep.subr.mxu0 %v705
    %1683 = vmatpush1.msra.mxu0 %v704
    %1684 = vmatprep.subr.mxu0 %v707
    %1685 = vmatpush1.msra.mxu0 %v706
    %1686 = vmatprep.subr.mxu0 %v709
    %1687 = vmatpush1.msra.mxu0 %v708
    %1688 = vmatprep.subr.mxu0 %v711
    %1689 = vmatpush1.msra.mxu0 %v710
    %1690 = vmatprep.subr.mxu0 %v713
    %1691 = vmatpush1.msra.mxu0 %v712
    %1692 = vmatprep.subr.mxu0 %v715
    %1693 = vmatpush1.msra.mxu0 %v714
    %1694 = vmatprep.subr.mxu0 %v717
    %1695 = vmatpush1.msra.mxu0 %v716
    %1696 = vmatprep.subr.mxu0 %v719
    %1697 = vmatpush1.msra.mxu0 %v718
    %1698 = vmatprep.subr.mxu0 %v721
    %1699 = vmatpush1.msra.mxu0 %v720
    %1700 = vmatprep.subr.mxu0 %v723
    %1701 = vmatpush1.msra.mxu0 %v722
    %1702 = vmatprep.subr.mxu0 %v725
    %1703 = vmatpush1.msra.mxu0 %v724
    %1704 = vmatprep.subr.mxu0 %v727
    %1705 = vmatpush1.msra.mxu0 %v726
    %1706 = vmatprep.subr.mxu0 %v729
    %1707 = vmatpush1.msra.mxu0 %v728
    %1708 = vmatprep.subr.mxu0 %v731
    %1709 = vmatpush1.msra.mxu0 %v730
    %1710 = vmatprep.subr.mxu0 %v733
    %1711 = vmatpush1.msra.mxu0 %v732
    %1712 = vmatprep.subr.mxu0 %v735
    %1713 = vmatpush1.msra.mxu0 %v734
    %1714 = vmatprep.subr.mxu0 %v737
    %1715 = vmatpush1.msra.mxu0 %v736
    %1716 = vmatprep.subr.mxu0 %v739
    %1717 = vmatpush1.msra.mxu0 %v738
    %1718 = vmatprep.subr.mxu0 %v741
    %1719 = vmatpush1.msra.mxu0 %v740
    %1720 = vmatprep.subr.mxu0 %v743
    %1721 = vmatpush1.msra.mxu0 %v742
    %1722 = vmatprep.subr.mxu0 %v745
    %1723 = vmatpush1.msra.mxu0 %v744
    %1724 = vmatprep.subr.mxu0 %v747
    %1725 = vmatpush1.msra.mxu0 %v746
    %1726 = vmatprep.subr.mxu0 %v749
    %1727 = vmatpush1.msra.mxu0 %v748
    %1728 = vmatprep.subr.mxu0 %v751
    %1729 = vmatpush1.msra.mxu0 %v750
    %1730 = vmatprep.subr.mxu0 %v753
    %1731 = vmatpush1.msra.mxu0 %v752
    %1732 = vmatprep.subr.mxu0 %v755
    %1733 = vmatpush1.msra.mxu0 %v754
    %1734 = vmatprep.subr.mxu0 %v757
    %1735 = vmatpush1.msra.mxu0 %v756
    %1736 = vmatprep.subr.mxu0 %v759
    %1737 = vmatpush1.msra.mxu0 %v758
    %1738 = vmatprep.subr.mxu0 %v761
    %1739 = vmatpush1.msra.mxu0 %v760
    %1740 = vmatprep.subr.mxu0 %v763
    %1741 = vmatpush1.msra.mxu0 %v762
    %1742 = vmatprep.subr.mxu0 %v765
    %1743 = vmatpush1.msra.mxu0 %v764
    %1744 = vmatprep.subr.mxu0 %v767
    %1745 = vmatpush1.msra.mxu0 %v766
    %1746 = vmatprep.mubr.f32.mxu0 %v1026
    %1747 = vmatmul.mubr.f32.gmra.mrb[0].mxu0 %v123
    %v1748 = vpop.f32.mrb[0].mxu0
    %v1749 = vadd.f32 %v1678, %v1748
    %v1750 = vpop.f32.mrb[0].mxu0
    %v1751 = vadd.f32 %v1680, %v1750
    %1752 = vdwg.mxu0
    %1753 = vmatprep.subr.mxu0 %v769
    %1754 = vmatpush1.msra.mxu0 %v768
    %1755 = vmatprep.subr.mxu0 %v771
    %1756 = vmatpush1.msra.mxu0 %v770
    %1757 = vmatprep.subr.mxu0 %v773
    %1758 = vmatpush1.msra.mxu0 %v772
    %1759 = vmatprep.subr.mxu0 %v775
    %1760 = vmatpush1.msra.mxu0 %v774
    %1761 = vmatprep.subr.mxu0 %v777
    %1762 = vmatpush1.msra.mxu0 %v776
    %1763 = vmatprep.subr.mxu0 %v779
    %1764 = vmatpush1.msra.mxu0 %v778
    %1765 = vmatprep.subr.mxu0 %v781
    %1766 = vmatpush1.msra.mxu0 %v780
    %1767 = vmatprep.subr.mxu0 %v783
    %1768 = vmatpush1.msra.mxu0 %v782
    %1769 = vmatprep.subr.mxu0 %v785
    %1770 = vmatpush1.msra.mxu0 %v784
    %1771 = vmatprep.subr.mxu0 %v787
    %1772 = vmatpush1.msra.mxu0 %v786
    %1773 = vmatprep.subr.mxu0 %v789
    %1774 = vmatpush1.msra.mxu0 %v788
    %1775 = vmatprep.subr.mxu0 %v791
    %1776 = vmatpush1.msra.mxu0 %v790
    %1777 = vmatprep.subr.mxu0 %v793
    %1778 = vmatpush1.msra.mxu0 %v792
    %1779 = vmatprep.subr.mxu0 %v795
    %1780 = vmatpush1.msra.mxu0 %v794
    %1781 = vmatprep.subr.mxu0 %v797
    %1782 = vmatpush1.msra.mxu0 %v796
    %1783 = vmatprep.subr.mxu0 %v799
    %1784 = vmatpush1.msra.mxu0 %v798
    %1785 = vmatprep.subr.mxu0 %v801
    %1786 = vmatpush1.msra.mxu0 %v800
    %1787 = vmatprep.subr.mxu0 %v803
    %1788 = vmatpush1.msra.mxu0 %v802
    %1789 = vmatprep.subr.mxu0 %v805
    %1790 = vmatpush1.msra.mxu0 %v804
    %1791 = vmatprep.subr.mxu0 %v807
    %1792 = vmatpush1.msra.mxu0 %v806
    %1793 = vmatprep.subr.mxu0 %v809
    %1794 = vmatpush1.msra.mxu0 %v808
    %1795 = vmatprep.subr.mxu0 %v811
    %1796 = vmatpush1.msra.mxu0 %v810
    %1797 = vmatprep.subr.mxu0 %v813
    %1798 = vmatpush1.msra.mxu0 %v812
    %1799 = vmatprep.subr.mxu0 %v815
    %1800 = vmatpush1.msra.mxu0 %v814
    %1801 = vmatprep.subr.mxu0 %v817
    %1802 = vmatpush1.msra.mxu0 %v816
    %1803 = vmatprep.subr.mxu0 %v819
    %1804 = vmatpush1.msra.mxu0 %v818
    %1805 = vmatprep.subr.mxu0 %v821
    %1806 = vmatpush1.msra.mxu0 %v820
    %1807 = vmatprep.subr.mxu0 %v823
    %1808 = vmatpush1.msra.mxu0 %v822
    %1809 = vmatprep.subr.mxu0 %v825
    %1810 = vmatpush1.msra.mxu0 %v824
    %1811 = vmatprep.subr.mxu0 %v827
    %1812 = vmatpush1.msra.mxu0 %v826
    %1813 = vmatprep.subr.mxu0 %v829
    %1814 = vmatpush1.msra.mxu0 %v828
    %1815 = vmatprep.subr.mxu0 %v831
    %1816 = vmatpush1.msra.mxu0 %v830
    %1817 = vmatprep.mubr.f32.mxu0 %v1027
    %1818 = vmatmul.mubr.f32.gmra.mrb[0].mxu0 %v124
    %v1819 = vpop.f32.mrb[0].mxu0
    %v1820 = vadd.f32 %v1749, %v1819
    %v1821 = vpop.f32.mrb[0].mxu0
    %v1822 = vadd.f32 %v1751, %v1821
    %1823 = vdwg.mxu0
    %1824 = vmatprep.subr.mxu0 %v833
    %1825 = vmatpush1.msra.mxu0 %v832
    %1826 = vmatprep.subr.mxu0 %v835
    %1827 = vmatpush1.msra.mxu0 %v834
    %1828 = vmatprep.subr.mxu0 %v837
    %1829 = vmatpush1.msra.mxu0 %v836
    %1830 = vmatprep.subr.mxu0 %v839
    %1831 = vmatpush1.msra.mxu0 %v838
    %1832 = vmatprep.subr.mxu0 %v841
    %1833 = vmatpush1.msra.mxu0 %v840
    %1834 = vmatprep.subr.mxu0 %v843
    %1835 = vmatpush1.msra.mxu0 %v842
    %1836 = vmatprep.subr.mxu0 %v845
    %1837 = vmatpush1.msra.mxu0 %v844
    %1838 = vmatprep.subr.mxu0 %v847
    %1839 = vmatpush1.msra.mxu0 %v846
    %1840 = vmatprep.subr.mxu0 %v849
    %1841 = vmatpush1.msra.mxu0 %v848
    %1842 = vmatprep.subr.mxu0 %v851
    %1843 = vmatpush1.msra.mxu0 %v850
    %1844 = vmatprep.subr.mxu0 %v853
    %1845 = vmatpush1.msra.mxu0 %v852
    %1846 = vmatprep.subr.mxu0 %v855
    %1847 = vmatpush1.msra.mxu0 %v854
    %1848 = vmatprep.subr.mxu0 %v857
    %1849 = vmatpush1.msra.mxu0 %v856
    %1850 = vmatprep.subr.mxu0 %v859
    %1851 = vmatpush1.msra.mxu0 %v858
    %1852 = vmatprep.subr.mxu0 %v861
    %1853 = vmatpush1.msra.mxu0 %v860
    %1854 = vmatprep.subr.mxu0 %v863
    %1855 = vmatpush1.msra.mxu0 %v862
    %1856 = vmatprep.subr.mxu0 %v865
    %1857 = vmatpush1.msra.mxu0 %v864
    %1858 = vmatprep.subr.mxu0 %v867
    %1859 = vmatpush1.msra.mxu0 %v866
    %1860 = vmatprep.subr.mxu0 %v869
    %1861 = vmatpush1.msra.mxu0 %v868
    %1862 = vmatprep.subr.mxu0 %v871
    %1863 = vmatpush1.msra.mxu0 %v870
    %1864 = vmatprep.subr.mxu0 %v873
    %1865 = vmatpush1.msra.mxu0 %v872
    %1866 = vmatprep.subr.mxu0 %v875
    %1867 = vmatpush1.msra.mxu0 %v874
    %1868 = vmatprep.subr.mxu0 %v877
    %1869 = vmatpush1.msra.mxu0 %v876
    %1870 = vmatprep.subr.mxu0 %v879
    %1871 = vmatpush1.msra.mxu0 %v878
    %1872 = vmatprep.subr.mxu0 %v881
    %1873 = vmatpush1.msra.mxu0 %v880
    %1874 = vmatprep.subr.mxu0 %v883
    %1875 = vmatpush1.msra.mxu0 %v882
    %1876 = vmatprep.subr.mxu0 %v885
    %1877 = vmatpush1.msra.mxu0 %v884
    %1878 = vmatprep.subr.mxu0 %v887
    %1879 = vmatpush1.msra.mxu0 %v886
    %1880 = vmatprep.subr.mxu0 %v889
    %1881 = vmatpush1.msra.mxu0 %v888
    %1882 = vmatprep.subr.mxu0 %v891
    %1883 = vmatpush1.msra.mxu0 %v890
    %1884 = vmatprep.subr.mxu0 %v893
    %1885 = vmatpush1.msra.mxu0 %v892
    %1886 = vmatprep.subr.mxu0 %v895
    %1887 = vmatpush1.msra.mxu0 %v894
    %1888 = vmatprep.mubr.f32.mxu0 %v1028
    %1889 = vmatmul.mubr.f32.gmra.mrb[0].mxu0 %v125
    %v1890 = vpop.f32.mrb[0].mxu0
    %v1891 = vadd.f32 %v1820, %v1890
    %v1892 = vpop.f32.mrb[0].mxu0
    %v1893 = vadd.f32 %v1822, %v1892
    %1894 = vdwg.mxu0
    %1895 = vmatprep.subr.mxu0 %v897
    %1896 = vmatpush1.msra.mxu0 %v896
    %1897 = vmatprep.subr.mxu0 %v899
    %1898 = vmatpush1.msra.mxu0 %v898
    %1899 = vmatprep.subr.mxu0 %v901
    %1900 = vmatpush1.msra.mxu0 %v900
    %1901 = vmatprep.subr.mxu0 %v903
    %1902 = vmatpush1.msra.mxu0 %v902
    %1903 = vmatprep.subr.mxu0 %v905
    %1904 = vmatpush1.msra.mxu0 %v904
    %1905 = vmatprep.subr.mxu0 %v907
    %1906 = vmatpush1.msra.mxu0 %v906
    %1907 = vmatprep.subr.mxu0 %v909
    %1908 = vmatpush1.msra.mxu0 %v908
    %1909 = vmatprep.subr.mxu0 %v911
    %1910 = vmatpush1.msra.mxu0 %v910
    %1911 = vmatprep.subr.mxu0 %v913
    %1912 = vmatpush1.msra.mxu0 %v912
    %1913 = vmatprep.subr.mxu0 %v915
    %1914 = vmatpush1.msra.mxu0 %v914
    %1915 = vmatprep.subr.mxu0 %v917
    %1916 = vmatpush1.msra.mxu0 %v916
    %1917 = vmatprep.subr.mxu0 %v919
    %1918 = vmatpush1.msra.mxu0 %v918
    %1919 = vmatprep.subr.mxu0 %v921
    %1920 = vmatpush1.msra.mxu0 %v920
    %1921 = vmatprep.subr.mxu0 %v923
    %1922 = vmatpush1.msra.mxu0 %v922
    %1923 = vmatprep.subr.mxu0 %v925
    %1924 = vmatpush1.msra.mxu0 %v924
    %1925 = vmatprep.subr.mxu0 %v927
    %1926 = vmatpush1.msra.mxu0 %v926
    %1927 = vmatprep.subr.mxu0 %v929
    %1928 = vmatpush1.msra.mxu0 %v928
    %1929 = vmatprep.subr.mxu0 %v931
    %1930 = vmatpush1.msra.mxu0 %v930
    %1931 = vmatprep.subr.mxu0 %v933
    %1932 = vmatpush1.msra.mxu0 %v932
    %1933 = vmatprep.subr.mxu0 %v935
    %1934 = vmatpush1.msra.mxu0 %v934
    %1935 = vmatprep.subr.mxu0 %v937
    %1936 = vmatpush1.msra.mxu0 %v936
    %1937 = vmatprep.subr.mxu0 %v939
    %1938 = vmatpush1.msra.mxu0 %v938
    %1939 = vmatprep.subr.mxu0 %v941
    %1940 = vmatpush1.msra.mxu0 %v940
    %1941 = vmatprep.subr.mxu0 %v943
    %1942 = vmatpush1.msra.mxu0 %v942
    %1943 = vmatprep.subr.mxu0 %v945
    %1944 = vmatpush1.msra.mxu0 %v944
    %1945 = vmatprep.subr.mxu0 %v947
    %1946 = vmatpush1.msra.mxu0 %v946
    %1947 = vmatprep.subr.mxu0 %v949
    %1948 = vmatpush1.msra.mxu0 %v948
    %1949 = vmatprep.subr.mxu0 %v951
    %1950 = vmatpush1.msra.mxu0 %v950
    %1951 = vmatprep.subr.mxu0 %v953
    %1952 = vmatpush1.msra.mxu0 %v952
    %1953 = vmatprep.subr.mxu0 %v955
    %1954 = vmatpush1.msra.mxu0 %v954
    %1955 = vmatprep.subr.mxu0 %v957
    %1956 = vmatpush1.msra.mxu0 %v956
    %1957 = vmatprep.subr.mxu0 %v959
    %1958 = vmatpush1.msra.mxu0 %v958
    %1959 = vmatprep.mubr.f32.mxu0 %v1029
    %1960 = vmatmul.mubr.f32.gmra.mrb[0].mxu0 %v126
    %v1961 = vpop.f32.mrb[0].mxu0
    %v1962 = vadd.f32 %v1891, %v1961
    %v1963 = vpop.f32.mrb[0].mxu0
    %v1964 = vadd.f32 %v1893, %v1963
    %1965 = vdwg.mxu0
    %1966 = vmatprep.subr.mxu0 %v961
    %1967 = vmatpush1.msra.mxu0 %v960
    %1968 = vmatprep.subr.mxu0 %v963
    %1969 = vmatpush1.msra.mxu0 %v962
    %1970 = vmatprep.subr.mxu0 %v965
    %1971 = vmatpush1.msra.mxu0 %v964
    %1972 = vmatprep.subr.mxu0 %v967
    %1973 = vmatpush1.msra.mxu0 %v966
    %1974 = vmatprep.subr.mxu0 %v969
    %1975 = vmatpush1.msra.mxu0 %v968
    %1976 = vmatprep.subr.mxu0 %v971
    %1977 = vmatpush1.msra.mxu0 %v970
    %1978 = vmatprep.subr.mxu0 %v973
    %1979 = vmatpush1.msra.mxu0 %v972
    %1980 = vmatprep.subr.mxu0 %v975
    %1981 = vmatpush1.msra.mxu0 %v974
    %1982 = vmatprep.subr.mxu0 %v977
    %1983 = vmatpush1.msra.mxu0 %v976
    %1984 = vmatprep.subr.mxu0 %v979
    %1985 = vmatpush1.msra.mxu0 %v978
    %1986 = vmatprep.subr.mxu0 %v981
    %1987 = vmatpush1.msra.mxu0 %v980
    %1988 = vmatprep.subr.mxu0 %v983
    %1989 = vmatpush1.msra.mxu0 %v982
    %1990 = vmatprep.subr.mxu0 %v985
    %1991 = vmatpush1.msra.mxu0 %v984
    %1992 = vmatprep.subr.mxu0 %v987
    %1993 = vmatpush1.msra.mxu0 %v986
    %1994 = vmatprep.subr.mxu0 %v989
    %1995 = vmatpush1.msra.mxu0 %v988
    %1996 = vmatprep.subr.mxu0 %v991
    %1997 = vmatpush1.msra.mxu0 %v990
    %1998 = vmatprep.subr.mxu0 0.0
    %1999 = vmatpush1.msra.mxu0 0.0
    %2000 = vmatprep.subr.mxu0 0.0
    %2001 = vmatpush1.msra.mxu0 0.0
    %2002 = vmatprep.subr.mxu0 0.0
    %2003 = vmatpush1.msra.mxu0 0.0
    %2004 = vmatprep.subr.mxu0 0.0
    %2005 = vmatpush1.msra.mxu0 0.0
    %2006 = vmatprep.subr.mxu0 0.0
    %2007 = vmatpush1.msra.mxu0 0.0
    %2008 = vmatprep.subr.mxu0 0.0
    %2009 = vmatpush1.msra.mxu0 0.0
    %2010 = vmatprep.subr.mxu0 0.0
    %2011 = vmatpush1.msra.mxu0 0.0
    %2012 = vmatprep.subr.mxu0 0.0
    %2013 = vmatpush1.msra.mxu0 0.0
    %2014 = vmatprep.subr.mxu0 0.0
    %2015 = vmatpush1.msra.mxu0 0.0
    %2016 = vmatprep.subr.mxu0 0.0
    %2017 = vmatpush1.msra.mxu0 0.0
    %2018 = vmatprep.subr.mxu0 0.0
    %2019 = vmatpush1.msra.mxu0 0.0
    %2020 = vmatprep.subr.mxu0 0.0
    %2021 = vmatpush1.msra.mxu0 0.0
    %2022 = vmatprep.subr.mxu0 0.0
    %2023 = vmatpush1.msra.mxu0 0.0
    %2024 = vmatprep.subr.mxu0 0.0
    %2025 = vmatpush1.msra.mxu0 0.0
    %2026 = vmatprep.subr.mxu0 0.0
    %2027 = vmatpush1.msra.mxu0 0.0
    %2028 = vmatprep.subr.mxu0 0.0
    %2029 = vmatpush1.msra.mxu0 0.0
    %2030 = vmatprep.mubr.f32.mxu0 0.0
    %2031 = vmatmul.mubr.f32.gmra.mrb[0].mxu0 %v127
    %v2032 = vpop.f32.mrb[0].mxu0
    %v2033 = vadd.f32 %v1962, %v2032
    %v2034 = vpop.f32.mrb[0].mxu0
    %v2035 = vadd.f32 %v1964, %v2034
    %2036 = vdwg.mxu0
    %v2037 = vmax.f32 %v2033, 0.0
    %v2038 = vmax.f32 %v2035, 0.0
    %v2039 = vld [vmem:[#allocation8] sm:$0xff]
    %v2040 = vld [vmem:[#allocation8 + $0x8] sm:$0xff]
    %v2041 = vld [vmem:[#allocation8 + $0x10] sm:$0xff]
    %v2042 = vld [vmem:[#allocation8 + $0x18] sm:$0xff]
    %v2043 = vld [vmem:[#allocation8 + $0x20] sm:$0xff]
    %v2044 = vld [vmem:[#allocation8 + $0x28] sm:$0xff]
    %v2045 = vld [vmem:[#allocation8 + $0x30] sm:$0xff]
    %v2046 = vld [vmem:[#allocation8 + $0x38] sm:$0xff]
    %v2047 = vld [vmem:[#allocation8 + $0x40] sm:$0xff]
    %v2048 = vld [vmem:[#allocation8 + $0x48] sm:$0xff]
    %v2049 = vld [vmem:[#allocation8 + $0x50] sm:$0xff]
    %v2050 = vld [vmem:[#allocation8 + $0x58] sm:$0xff]
    %v2051 = vld [vmem:[#allocation8 + $0x60] sm:$0xff]
    %v2052 = vld [vmem:[#allocation8 + $0x68] sm:$0xff]
    %v2053 = vld [vmem:[#allocation8 + $0x70] sm:$0xff]
    %v2054 = vld [vmem:[#allocation8 + $0x78] sm:$0xff]
    %v2055 = vld [vmem:[#allocation8 + $0x80] sm:$0xff]
    %v2056 = vld [vmem:[#allocation8 + $0x88] sm:$0xff]
    %v2057 = vld [vmem:[#allocation8 + $0x90] sm:$0xff]
    %v2058 = vld [vmem:[#allocation8 + $0x98] sm:$0xff]
    %v2059 = vld [vmem:[#allocation8 + $0xa0] sm:$0xff]
    %v2060 = vld [vmem:[#allocation8 + $0xa8] sm:$0xff]
    %v2061 = vld [vmem:[#allocation8 + $0xb0] sm:$0xff]
    %v2062 = vld [vmem:[#allocation8 + $0xb8] sm:$0xff]
    %v2063 = vld [vmem:[#allocation8 + $0xc0] sm:$0xff]
    %v2064 = vld [vmem:[#allocation8 + $0xc8] sm:$0xff]
    %v2065 = vld [vmem:[#allocation8 + $0xd0] sm:$0xff]
    %v2066 = vld [vmem:[#allocation8 + $0xd8] sm:$0xff]
    %v2067 = vld [vmem:[#allocation8 + $0xe0] sm:$0xff]
    %v2068 = vld [vmem:[#allocation8 + $0xe8] sm:$0xff]
    %v2069 = vld [vmem:[#allocation8 + $0xf0] sm:$0xff]
    %v2070 = vld [vmem:[#allocation8 + $0xf8] sm:$0xff]
    %v2071 = vld [vmem:[#allocation8 + $0x100] sm:$0xff]
    %v2072 = vld [vmem:[#allocation8 + $0x108] sm:$0xff]
    %v2073 = vld [vmem:[#allocation8 + $0x110] sm:$0xff]
    %v2074 = vld [vmem:[#allocation8 + $0x118] sm:$0xff]
    %v2075 = vld [vmem:[#allocation8 + $0x120] sm:$0xff]
    %v2076 = vld [vmem:[#allocation8 + $0x128] sm:$0xff]
    %v2077 = vld [vmem:[#allocation8 + $0x130] sm:$0xff]
    %v2078 = vld [vmem:[#allocation8 + $0x138] sm:$0xff]
    %v2079 = vld [vmem:[#allocation8 + $0x140] sm:$0xff]
    %v2080 = vld [vmem:[#allocation8 + $0x148] sm:$0xff]
    %v2081 = vld [vmem:[#allocation8 + $0x150] sm:$0xff]
    %v2082 = vld [vmem:[#allocation8 + $0x158] sm:$0xff]
    %v2083 = vld [vmem:[#allocation8 + $0x160] sm:$0xff]
    %v2084 = vld [vmem:[#allocation8 + $0x168] sm:$0xff]
    %v2085 = vld [vmem:[#allocation8 + $0x170] sm:$0xff]
    %v2086 = vld [vmem:[#allocation8 + $0x178] sm:$0xff]
    %v2087 = vld [vmem:[#allocation8 + $0x180] sm:$0xff]
    %v2088 = vld [vmem:[#allocation8 + $0x188] sm:$0xff]
    %v2089 = vld [vmem:[#allocation8 + $0x190] sm:$0xff]
    %v2090 = vld [vmem:[#allocation8 + $0x198] sm:$0xff]
    %v2091 = vld [vmem:[#allocation8 + $0x1a0] sm:$0xff]
    %v2092 = vld [vmem:[#allocation8 + $0x1a8] sm:$0xff]
    %v2093 = vld [vmem:[#allocation8 + $0x1b0] sm:$0xff]
    %v2094 = vld [vmem:[#allocation8 + $0x1b8] sm:$0xff]
    %v2095 = vld [vmem:[#allocation8 + $0x1c0] sm:$0xff]
    %v2096 = vld [vmem:[#allocation8 + $0x1c8] sm:$0xff]
    %v2097 = vld [vmem:[#allocation8 + $0x1d0] sm:$0xff]
    %v2098 = vld [vmem:[#allocation8 + $0x1d8] sm:$0xff]
    %v2099 = vld [vmem:[#allocation8 + $0x1e0] sm:$0xff]
    %v2100 = vld [vmem:[#allocation8 + $0x1e8] sm:$0xff]
    %v2101 = vld [vmem:[#allocation8 + $0x1f0] sm:$0xff]
    %v2102 = vld [vmem:[#allocation8 + $0x1f8] sm:$0xff]
    %v2103 = vld [vmem:[#allocation10] sm:$0x3]
    %v2105 = vlaneseq
    %v2106 = vshrl.u32 %v2105, 7
    %v2107 = vsub.s32 0, %v2106
    %v2108 = vrot.slane %v2103, %v2107
    %v2109 = vlaneseq
    %v2110 = vshrl.u32 %v2109, 7
    %v2111 = vsub.s32 1, %v2110
    %v2112 = vrot.slane %v2103, %v2111
    %2115 = vmatprep.subr.mxu0 %v2040
    %2116 = vmatpush1.msra.mxu0 %v2039
    %2117 = vmatprep.subr.mxu0 %v2042
    %2118 = vmatpush1.msra.mxu0 %v2041
    %2119 = vmatprep.subr.mxu0 %v2044
    %2120 = vmatpush1.msra.mxu0 %v2043
    %2121 = vmatprep.subr.mxu0 %v2046
    %2122 = vmatpush1.msra.mxu0 %v2045
    %2123 = vmatprep.subr.mxu0 %v2048
    %2124 = vmatpush1.msra.mxu0 %v2047
    %2125 = vmatprep.subr.mxu0 %v2050
    %2126 = vmatpush1.msra.mxu0 %v2049
    %2127 = vmatprep.subr.mxu0 %v2052
    %2128 = vmatpush1.msra.mxu0 %v2051
    %2129 = vmatprep.subr.mxu0 %v2054
    %2130 = vmatpush1.msra.mxu0 %v2053
    %2131 = vmatprep.subr.mxu0 %v2056
    %2132 = vmatpush1.msra.mxu0 %v2055
    %2133 = vmatprep.subr.mxu0 %v2058
    %2134 = vmatpush1.msra.mxu0 %v2057
    %2135 = vmatprep.subr.mxu0 %v2060
    %2136 = vmatpush1.msra.mxu0 %v2059
    %2137 = vmatprep.subr.mxu0 %v2062
    %2138 = vmatpush1.msra.mxu0 %v2061
    %2139 = vmatprep.subr.mxu0 %v2064
    %2140 = vmatpush1.msra.mxu0 %v2063
    %2141 = vmatprep.subr.mxu0 %v2066
    %2142 = vmatpush1.msra.mxu0 %v2065
    %2143 = vmatprep.subr.mxu0 %v2068
    %2144 = vmatpush1.msra.mxu0 %v2067
    %2145 = vmatprep.subr.mxu0 %v2070
    %2146 = vmatpush1.msra.mxu0 %v2069
    %2147 = vmatprep.subr.mxu0 %v2072
    %2148 = vmatpush1.msra.mxu0 %v2071
    %2149 = vmatprep.subr.mxu0 %v2074
    %2150 = vmatpush1.msra.mxu0 %v2073
    %2151 = vmatprep.subr.mxu0 %v2076
    %2152 = vmatpush1.msra.mxu0 %v2075
    %2153 = vmatprep.subr.mxu0 %v2078
    %2154 = vmatpush1.msra.mxu0 %v2077
    %2155 = vmatprep.subr.mxu0 %v2080
    %2156 = vmatpush1.msra.mxu0 %v2079
    %2157 = vmatprep.subr.mxu0 %v2082
    %2158 = vmatpush1.msra.mxu0 %v2081
    %2159 = vmatprep.subr.mxu0 %v2084
    %2160 = vmatpush1.msra.mxu0 %v2083
    %2161 = vmatprep.subr.mxu0 %v2086
    %2162 = vmatpush1.msra.mxu0 %v2085
    %2163 = vmatprep.subr.mxu0 %v2088
    %2164 = vmatpush1.msra.mxu0 %v2087
    %2165 = vmatprep.subr.mxu0 %v2090
    %2166 = vmatpush1.msra.mxu0 %v2089
    %2167 = vmatprep.subr.mxu0 %v2092
    %2168 = vmatpush1.msra.mxu0 %v2091
    %2169 = vmatprep.subr.mxu0 %v2094
    %2170 = vmatpush1.msra.mxu0 %v2093
    %2171 = vmatprep.subr.mxu0 %v2096
    %2172 = vmatpush1.msra.mxu0 %v2095
    %2173 = vmatprep.subr.mxu0 %v2098
    %2174 = vmatpush1.msra.mxu0 %v2097
    %2175 = vmatprep.subr.mxu0 %v2100
    %2176 = vmatpush1.msra.mxu0 %v2099
    %2177 = vmatprep.subr.mxu0 %v2102
    %2178 = vmatpush1.msra.mxu0 %v2101
    %2179 = vmatprep.mubr.f32.mxu0 %v2038
    %2180 = vmatmul.mubr.f32.gmra.mrb[0].mxu0 %v2037
    %v2181 = vpop.f32.mrb[0].mxu0
    %v2182 = vadd.f32 %v2108, %v2181
    %v2183 = vpop.f32.mrb[0].mxu0
    %v2184 = vadd.f32 %v2112, %v2183
    %2185 = vdwg.mxu0
    %v2186 = vmax.f32 %v2182, 0.0
    %v2187 = vmax.f32 %v2184, 0.0
    %v2188 = vld [vmem:[#allocation11] sm:$0xff]
    %v2189 = vld [vmem:[#allocation11 + $0x8] sm:$0xff]
    %v2190 = vld [vmem:[#allocation11 + $0x10] sm:$0xff]
    %v2191 = vld [vmem:[#allocation11 + $0x18] sm:$0xff]
    %v2192 = vld [vmem:[#allocation11 + $0x20] sm:$0xff]
    %v2193 = vld [vmem:[#allocation11 + $0x28] sm:$0xff]
    %v2194 = vld [vmem:[#allocation11 + $0x30] sm:$0xff]
    %v2195 = vld [vmem:[#allocation11 + $0x38] sm:$0xff]
    %v2196 = vld [vmem:[#allocation11 + $0x40] sm:$0xff]
    %v2197 = vld [vmem:[#allocation11 + $0x48] sm:$0xff]
    %v2198 = vld [vmem:[#allocation11 + $0x50] sm:$0xff]
    %v2199 = vld [vmem:[#allocation11 + $0x58] sm:$0xff]
    %v2200 = vld [vmem:[#allocation11 + $0x60] sm:$0xff]
    %v2201 = vld [vmem:[#allocation11 + $0x68] sm:$0xff]
    %v2202 = vld [vmem:[#allocation11 + $0x70] sm:$0xff]
    %v2203 = vld [vmem:[#allocation11 + $0x78] sm:$0xff]
    %v2204 = vld [vmem:[#allocation11 + $0x80] sm:$0xff]
    %v2205 = vld [vmem:[#allocation11 + $0x88] sm:$0xff]
    %v2206 = vld [vmem:[#allocation11 + $0x90] sm:$0xff]
    %v2207 = vld [vmem:[#allocation11 + $0x98] sm:$0xff]
    %v2208 = vld [vmem:[#allocation11 + $0xa0] sm:$0xff]
    %v2209 = vld [vmem:[#allocation11 + $0xa8] sm:$0xff]
    %v2210 = vld [vmem:[#allocation11 + $0xb0] sm:$0xff]
    %v2211 = vld [vmem:[#allocation11 + $0xb8] sm:$0xff]
    %v2212 = vld [vmem:[#allocation11 + $0xc0] sm:$0xff]
    %v2213 = vld [vmem:[#allocation11 + $0xc8] sm:$0xff]
    %v2214 = vld [vmem:[#allocation11 + $0xd0] sm:$0xff]
    %v2215 = vld [vmem:[#allocation11 + $0xd8] sm:$0xff]
    %v2216 = vld [vmem:[#allocation11 + $0xe0] sm:$0xff]
    %v2217 = vld [vmem:[#allocation11 + $0xe8] sm:$0xff]
    %v2218 = vld [vmem:[#allocation11 + $0xf0] sm:$0xff]
    %v2219 = vld [vmem:[#allocation11 + $0xf8] sm:$0xff]
    %v2220 = vld [vmem:[#allocation11 + $0x100] sm:$0xff]
    %v2221 = vld [vmem:[#allocation11 + $0x108] sm:$0xff]
    %v2222 = vld [vmem:[#allocation11 + $0x110] sm:$0xff]
    %v2223 = vld [vmem:[#allocation11 + $0x118] sm:$0xff]
    %v2224 = vld [vmem:[#allocation11 + $0x120] sm:$0xff]
    %v2225 = vld [vmem:[#allocation11 + $0x128] sm:$0xff]
    %v2226 = vld [vmem:[#allocation11 + $0x130] sm:$0xff]
    %v2227 = vld [vmem:[#allocation11 + $0x138] sm:$0xff]
    %v2228 = vld [vmem:[#allocation11 + $0x140] sm:$0xff]
    %v2229 = vld [vmem:[#allocation11 + $0x148] sm:$0xff]
    %v2230 = vld [vmem:[#allocation11 + $0x150] sm:$0xff]
    %v2231 = vld [vmem:[#allocation11 + $0x158] sm:$0xff]
    %v2232 = vld [vmem:[#allocation11 + $0x160] sm:$0xff]
    %v2233 = vld [vmem:[#allocation11 + $0x168] sm:$0xff]
    %v2234 = vld [vmem:[#allocation11 + $0x170] sm:$0xff]
    %v2235 = vld [vmem:[#allocation11 + $0x178] sm:$0xff]
    %v2236 = vld [vmem:[#allocation11 + $0x180] sm:$0xff]
    %v2237 = vld [vmem:[#allocation11 + $0x188] sm:$0xff]
    %v2238 = vld [vmem:[#allocation11 + $0x190] sm:$0xff]
    %v2239 = vld [vmem:[#allocation11 + $0x198] sm:$0xff]
    %v2240 = vld [vmem:[#allocation11 + $0x1a0] sm:$0xff]
    %v2241 = vld [vmem:[#allocation11 + $0x1a8] sm:$0xff]
    %v2242 = vld [vmem:[#allocation11 + $0x1b0] sm:$0xff]
    %v2243 = vld [vmem:[#allocation11 + $0x1b8] sm:$0xff]
    %v2244 = vld [vmem:[#allocation11 + $0x1c0] sm:$0xff]
    %v2245 = vld [vmem:[#allocation11 + $0x1c8] sm:$0xff]
    %v2246 = vld [vmem:[#allocation11 + $0x1d0] sm:$0xff]
    %v2247 = vld [vmem:[#allocation11 + $0x1d8] sm:$0xff]
    %v2248 = vld [vmem:[#allocation11 + $0x1e0] sm:$0xff]
    %v2249 = vld [vmem:[#allocation11 + $0x1e8] sm:$0xff]
    %v2250 = vld [vmem:[#allocation11 + $0x1f0] sm:$0xff]
    %v2251 = vld [vmem:[#allocation11 + $0x1f8] sm:$0xff]
    %v2252 = vld [vmem:[#allocation13] sm:$0x3]
    %v2254 = vlaneseq
    %v2255 = vshrl.u32 %v2254, 7
    %v2256 = vsub.s32 0, %v2255
    %v2257 = vrot.slane %v2252, %v2256
    %v2258 = vlaneseq
    %v2259 = vshrl.u32 %v2258, 7
    %v2260 = vsub.s32 1, %v2259
    %v2261 = vrot.slane %v2252, %v2260
    %2264 = vmatprep.subr.mxu0 %v2189
    %2265 = vmatpush1.msra.mxu0 %v2188
    %2266 = vmatprep.subr.mxu0 %v2191
    %2267 = vmatpush1.msra.mxu0 %v2190
    %2268 = vmatprep.subr.mxu0 %v2193
    %2269 = vmatpush1.msra.mxu0 %v2192
    %2270 = vmatprep.subr.mxu0 %v2195
    %2271 = vmatpush1.msra.mxu0 %v2194
    %2272 = vmatprep.subr.mxu0 %v2197
    %2273 = vmatpush1.msra.mxu0 %v2196
    %2274 = vmatprep.subr.mxu0 %v2199
    %2275 = vmatpush1.msra.mxu0 %v2198
    %2276 = vmatprep.subr.mxu0 %v2201
    %2277 = vmatpush1.msra.mxu0 %v2200
    %2278 = vmatprep.subr.mxu0 %v2203
    %2279 = vmatpush1.msra.mxu0 %v2202
    %2280 = vmatprep.subr.mxu0 %v2205
    %2281 = vmatpush1.msra.mxu0 %v2204
    %2282 = vmatprep.subr.mxu0 %v2207
    %2283 = vmatpush1.msra.mxu0 %v2206
    %2284 = vmatprep.subr.mxu0 %v2209
    %2285 = vmatpush1.msra.mxu0 %v2208
    %2286 = vmatprep.subr.mxu0 %v2211
    %2287 = vmatpush1.msra.mxu0 %v2210
    %2288 = vmatprep.subr.mxu0 %v2213
    %2289 = vmatpush1.msra.mxu0 %v2212
    %2290 = vmatprep.subr.mxu0 %v2215
    %2291 = vmatpush1.msra.mxu0 %v2214
    %2292 = vmatprep.subr.mxu0 %v2217
    %2293 = vmatpush1.msra.mxu0 %v2216
    %2294 = vmatprep.subr.mxu0 %v2219
    %2295 = vmatpush1.msra.mxu0 %v2218
    %2296 = vmatprep.subr.mxu0 %v2221
    %2297 = vmatpush1.msra.mxu0 %v2220
    %2298 = vmatprep.subr.mxu0 %v2223
    %2299 = vmatpush1.msra.mxu0 %v2222
    %2300 = vmatprep.subr.mxu0 %v2225
    %2301 = vmatpush1.msra.mxu0 %v2224
    %2302 = vmatprep.subr.mxu0 %v2227
    %2303 = vmatpush1.msra.mxu0 %v2226
    %2304 = vmatprep.subr.mxu0 %v2229
    %2305 = vmatpush1.msra.mxu0 %v2228
    %2306 = vmatprep.subr.mxu0 %v2231
    %2307 = vmatpush1.msra.mxu0 %v2230
    %2308 = vmatprep.subr.mxu0 %v2233
    %2309 = vmatpush1.msra.mxu0 %v2232
    %2310 = vmatprep.subr.mxu0 %v2235
    %2311 = vmatpush1.msra.mxu0 %v2234
    %2312 = vmatprep.subr.mxu0 %v2237
    %2313 = vmatpush1.msra.mxu0 %v2236
    %2314 = vmatprep.subr.mxu0 %v2239
    %2315 = vmatpush1.msra.mxu0 %v2238
    %2316 = vmatprep.subr.mxu0 %v2241
    %2317 = vmatpush1.msra.mxu0 %v2240
    %2318 = vmatprep.subr.mxu0 %v2243
    %2319 = vmatpush1.msra.mxu0 %v2242
    %2320 = vmatprep.subr.mxu0 %v2245
    %2321 = vmatpush1.msra.mxu0 %v2244
    %2322 = vmatprep.subr.mxu0 %v2247
    %2323 = vmatpush1.msra.mxu0 %v2246
    %2324 = vmatprep.subr.mxu0 %v2249
    %2325 = vmatpush1.msra.mxu0 %v2248
    %2326 = vmatprep.subr.mxu0 %v2251
    %2327 = vmatpush1.msra.mxu0 %v2250
    %2328 = vmatprep.mubr.f32.mxu0 %v2187
    %2329 = vmatmul.mubr.f32.gmra.mrb[0].mxu0 %v2186
    %v2330 = vpop.f32.mrb[0].mxu0
    %v2331 = vadd.f32 %v2257, %v2330
    %v2332 = vpop.f32.mrb[0].mxu0
    %v2333 = vadd.f32 %v2261, %v2332
    %2334 = vdwg.mxu0
    %v2335 = vtanh.pop %v2331
    %v2336 = vtanh.pop %v2333
    %v2339 = vcombine.low %v2335, %v2336
    %2341 = vst [vmem:[#allocation14] sm:$0xff] %v2339
    // Predicated region
    $region58: #{tpu_custom_call.1} parent=1 // pred_check
      _
    $region59: #{tpu_custom_call.1} parent=1 // pred_check_branch
      %2343 = sbr.rel (0) target = $region61
    $region60: #{tpu_custom_call.1} parent=1 // pred_region
      %s2345 = ssub.s32 128, 128
      %2346 = vsyncadd [#allocation4], %s2345
      %s2348 = sshll.u32 [#allocation14], 4
      %s2349 = int_to_ptr.vmem [resolvable:$true] %s2348
      %2351 = dma.vmem_to_hbm [thread:$0]  %s2349, 128, %s7, [#allocation4]
    $region61: #{tpu_custom_call.1} parent=1 // pred_fallthru
      _
    // Predicated region
    $region62: #{tpu_custom_call.1} parent=1 // pred_check
      _
    $region63: #{tpu_custom_call.1} parent=1 // pred_check_branch
      %2353 = sbr.rel (0) target = $region65
    $region64: #{tpu_custom_call.1} parent=1 // pred_region
      %2354 = dma.done [#allocation4], 128
    $region65: #{tpu_custom_call.1} parent=1 // pred_fallthru
      _
    %2355 = vsyncpa [#allocation3], 1
    %2356 = vsyncpa [#allocation6], 1
    %2357 = vsyncpa [#allocation9], 1
    %2358 = vsyncpa [#allocation12], 1
    %2359 = vsyncpa [#allocation4], 1

</llo_original>
